<compile_context>
chip_gen: v6e
topology: v6e:2x2x1
jax: 0.10.0
libtpu: 0.0.40
codegen_flags: <defaults>
</compile_context>

<pallas_src>
import functools

import numpy as np

import jax
import jax.numpy as jnp
from jax.experimental import pallas as pl
from jax.experimental.pallas import tpu as pltpu


# --------------------------------------------------------------------------
# Pallas kernels
# --------------------------------------------------------------------------
def _disc_branch_kernel(x_ref, w1_ref, w2_ref, w3_ref, a1_ref, a2_ref, a3_ref,
                        h1_ref, h2_ref, h3_ref):
    """Fused 3-layer discriminator branch for one (branch, batch-element).

    x_ref : (1, 1, T, Cin)   channels-last input slice
    wN_ref: (1, 3, CinN, H)  conv taps k=0,1,2 (tap k multiplies x[2t + k - 1])
    aN_ref: (1, 3, H)        rows = [conv bias, bn scale, bn shift]
    hN_ref: (1, 1, T_N, H)   per-layer hidden outputs (channels-last)
    """
    x = x_ref[...].reshape(x_ref.shape[2], x_ref.shape[3]).astype(jnp.float32)

    for w_ref, aux_ref, h_ref in ((w1_ref, a1_ref, h1_ref),
                                  (w2_ref, a2_ref, h2_ref),
                                  (w3_ref, a3_ref, h3_ref)):
        t_in = x.shape[0]
        t_out, c_out = h_ref.shape[2], h_ref.shape[3]
        w = w_ref[...]        # (1, 3, c_in, c_out)
        aux = aux_ref[...]    # (1, 3, c_out)

        # Conv1d(k=3, stride=2, pad=1) as three tap matmuls.  The strided /
        # zero-padded tap gather is expressed with tiny 0/1 selection matrices
        # on the MXU, so no strided or gathered memory access is needed and the
        # boundary padding falls out of the all-zero selection rows.
        rows = jax.lax.broadcasted_iota(jnp.int32, (t_out, t_in), 0)
        cols = jax.lax.broadcasted_iota(jnp.int32, (t_out, t_in), 1)
        acc = jnp.zeros((t_out, c_out), jnp.float32)
        for k in range(3):
            sel = (cols == 2 * rows + (k - 1)).astype(jnp.float32)        # (t_out, t_in)
            tap = jnp.dot(sel, x, preferred_element_type=jnp.float32)     # (t_out, c_in)
            acc = acc + jnp.dot(tap, w[0, k], preferred_element_type=jnp.float32)

        y = acc + aux[0, 0:1, :]                    # conv bias
        y = jnp.where(y > 0.0, y, 0.2 * y)          # LeakyReLU(0.2)
        # Dropout2d(0.25) is identity in eval mode.
        # TODO(synk): training-mode Dropout2d / batch-statistics BatchNorm not implemented.
        y = y * aux[0, 1:2, :] + aux[0, 2:3, :]     # folded eval BatchNorm1d (identity for layer 1)

        h_ref[...] = y.reshape(h_ref.shape).astype(h_ref.dtype)
        x = y


def _cosine_kernel(h_ref, o_ref):
    """ReLU + cosine similarity over the two branches' final hiddens.

    h_ref: (2, B, T3, H) stacked final hiddens; o_ref: (B, 1).
    Sum order over (T3, H) is irrelevant to dot/norms, so no flatten/transpose.
    """
    h = h_ref[...]
    a = jnp.maximum(h[0], 0.0)
    b = jnp.maximum(h[1], 0.0)
    dot = jnp.sum(jnp.sum(a * b, axis=-1), axis=-1, keepdims=True)   # (B, 1)
    na2 = jnp.sum(jnp.sum(a * a, axis=-1), axis=-1, keepdims=True)
    nb2 = jnp.sum(jnp.sum(b * b, axis=-1), axis=-1, keepdims=True)
    eps2 = jnp.float32(1e-16)   # torch F.cosine_similarity eps=1e-8, squared
    o_ref[...] = dot * jax.lax.rsqrt(jnp.maximum(na2 * nb2, eps2))


# --------------------------------------------------------------------------
# pallas_call wrappers
# --------------------------------------------------------------------------
def _run_branches(params, xs):
    """xs: (2, B, T, Cin) channels-last stacked inputs -> 3 stacked hiddens."""
    _, B, T, Cin = xs.shape
    H = params["w1"].shape[-1]
    T1 = (T - 1) // 2 + 1
    T2 = (T1 - 1) // 2 + 1
    T3 = (T2 - 1) // 2 + 1

    return pl.pallas_call(
        _disc_branch_kernel,
        out_shape=(jax.ShapeDtypeStruct((2, B, T1, H), jnp.float32),
                   jax.ShapeDtypeStruct((2, B, T2, H), jnp.float32),
                   jax.ShapeDtypeStruct((2, B, T3, H), jnp.float32)),
        grid=(2, B),
        in_specs=[
            pl.BlockSpec((1, 1, T, Cin), lambda br, b: (br, b, 0, 0)),
            pl.BlockSpec((1, 3, Cin, H), lambda br, b: (br, 0, 0, 0)),
            pl.BlockSpec((1, 3, H, H), lambda br, b: (br, 0, 0, 0)),
            pl.BlockSpec((1, 3, H, H), lambda br, b: (br, 0, 0, 0)),
            pl.BlockSpec((1, 3, H), lambda br, b: (br, 0, 0)),
            pl.BlockSpec((1, 3, H), lambda br, b: (br, 0, 0)),
            pl.BlockSpec((1, 3, H), lambda br, b: (br, 0, 0)),
        ],
        out_specs=(
            pl.BlockSpec((1, 1, T1, H), lambda br, b: (br, b, 0, 0)),
            pl.BlockSpec((1, 1, T2, H), lambda br, b: (br, b, 0, 0)),
            pl.BlockSpec((1, 1, T3, H), lambda br, b: (br, b, 0, 0)),
        ),
        compiler_params=pltpu.CompilerParams(
            dimension_semantics=("parallel", "parallel")),
    )(xs, params["w1"], params["w2"], params["w3"],
      params["aux1"], params["aux2"], params["aux3"])


def _cosine_validity(h3_stacked):
    _, B, T3, H = h3_stacked.shape
    out = pl.pallas_call(
        _cosine_kernel,
        out_shape=jax.ShapeDtypeStruct((B, 1), jnp.float32),
        grid=(1,),
        in_specs=[pl.BlockSpec((2, B, T3, H), lambda i: (0, 0, 0, 0))],
        out_specs=pl.BlockSpec((B, 1), lambda i: (0, 0)),
    )(h3_stacked)
    return out[:, 0]


def cosine_discriminator_forward(params, x1_nct, x2_nct):
    """x1, x2: [B, C, T] (PyTorch layout). Returns (validity [B], [h1, h2]), hiddens in NCT."""
    xs = jnp.transpose(jnp.stack([x1_nct, x2_nct], axis=0), (0, 1, 3, 2))   # (2, B, T, C)
    h1s, h2s, h3s = _run_branches(params, xs)

    h1 = [jnp.transpose(h1s[0], (0, 2, 1)),
          jnp.transpose(h2s[0], (0, 2, 1)),
          jnp.transpose(h3s[0], (0, 2, 1))]
    # Reproduces the PyTorch reference: the second loop appends x1 (model1's final hidden).
    h2 = [h1[2], h1[2], h1[2]]

    validity = _cosine_validity(h3s)
    return validity, [h1, h2]


# --------------------------------------------------------------------------
# Deterministic synthetic parameters (eval-mode BN folded into scale/shift)
# --------------------------------------------------------------------------
def make_params(key, in_dim, hidden_size, bn_eps=0.8):
    h = hidden_size
    layer_dims = [(in_dim, True), (h, False), (h, False)]
    keys = jax.random.split(key, 2 * len(layer_dims))
    per_branch = []
    idx = 0
    for _ in range(2):
        layers = []
        for cin, first in layer_dims:
            k1, k2, k3, k4, k5, k6 = jax.random.split(keys[idx], 6)
            idx += 1
            w = 0.1 * jax.random.normal(k1, (3, cin, h), jnp.float32)   # tap, Cin, Cout
            b = 0.01 * jax.random.normal(k2, (h,), jnp.float32)
            if first:
                scale = jnp.ones((h,), jnp.float32)
                shift = jnp.zeros((h,), jnp.float32)
            else:
                gamma = 1.0 + 0.05 * jax.random.normal(k3, (h,), jnp.float32)
                beta = 0.05 * jax.random.normal(k4, (h,), jnp.float32)
                running_mean = 0.1 * jax.random.normal(k5, (h,), jnp.float32)
                running_var = 0.5 + jax.random.uniform(k6, (h,), jnp.float32)
                inv = gamma * jax.lax.rsqrt(running_var + bn_eps)   # BatchNorm1d(h, eps=0.8)
                scale = inv
                shift = beta - running_mean * inv
            aux = jnp.stack([b, scale, shift], axis=0)   # (3, h)
            layers.append((w, aux))
        per_branch.append(layers)

    params = {}
    for l in range(3):
        params[f"w{l + 1}"] = jnp.stack([per_branch[0][l][0], per_branch[1][l][0]], axis=0)
        params[f"aux{l + 1}"] = jnp.stack([per_branch[0][l][1], per_branch[1][l][1]], axis=0)
    return params


# --------------------------------------------------------------------------
# Pure-JAX/XLA reference (independent path, used to validate the kernels)
# --------------------------------------------------------------------------
def reference_forward(params, x1_nct, x2_nct):
    def block(x, w, aux):
        wc = jnp.transpose(w, (2, 1, 0))   # (Cout, Cin, K)
        y = jax.lax.conv_general_dilated(
            x, wc, window_strides=(2,), padding=((1, 1),),
            dimension_numbers=("NCH", "OIH", "NCH"))
        y = y + aux[0][None, :, None]
        y = jnp.where(y > 0, y, 0.2 * y)
        y = y * aux[1][None, :, None] + aux[2][None, :, None]
        return y

    h1, h2 = [], []
    x1, x2 = x1_nct, x2_nct
    for l in range(3):
        x1 = block(x1, params[f"w{l + 1}"][0], params[f"aux{l + 1}"][0])
        h1.append(x1)
    for l in range(3):
        x2 = block(x2, params[f"w{l + 1}"][1], params[f"aux{l + 1}"][1])
        h2.append(x1)
    b = x1.shape[0]
    f1 = jnp.maximum(x1.reshape(b, -1), 0.0)
    f2 = jnp.maximum(x2.reshape(b, -1), 0.0)
    dot = jnp.sum(f1 * f2, axis=1)
    na2 = jnp.sum(f1 * f1, axis=1)
    nb2 = jnp.sum(f2 * f2, axis=1)
    validity = dot * jax.lax.rsqrt(jnp.maximum(na2 * nb2, 1e-16))
    return validity, [h1, h2]


if __name__ == "__main__":
    B, C, T = 2, 4, 32       # batch, in_dim, time_length
    HIDDEN = 128             # module default; multiple of 128 keeps stores lane-dense

    key = jax.random.PRNGKey(0)
    kp, kx1, kx2 = jax.random.split(key, 3)
    params = make_params(kp, in_dim=C, hidden_size=HIDDEN)
    x1 = jax.random.normal(kx1, (B, C, T), jnp.float32)
    x2 = jax.random.normal(kx2, (B, C, T), jnp.float32)

    fwd = jax.jit(functools.partial(cosine_discriminator_forward, params))
    validity, (h1, h2) = fwd(x1, x2)
    jax.block_until_ready((validity, h1, h2))

    # shape checks (torch module semantics)
    assert validity.shape == (B,)
    assert h1[0].shape == (B, HIDDEN, T // 2)
    assert h1[1].shape == (B, HIDDEN, T // 4)
    assert h1[2].shape == (B, HIDDEN, T // 8)
    assert h2[0].shape == (B, HIDDEN, T // 8)

    # correctness vs. an independent XLA reference of the same eval-mode forward
    ref_validity, (ref_h1, _) = reference_forward(params, x1, x2)
    np.testing.assert_allclose(np.asarray(validity), np.asarray(ref_validity),
                               rtol=2e-4, atol=2e-4)
    for got, want in zip(h1, ref_h1):
        np.testing.assert_allclose(np.asarray(got), np.asarray(want),
                                   rtol=2e-4, atol=2e-4)

    print("KERNEL_OK")
</pallas_src>

<mosaic_0001>
module attributes {stable_mosaic.version = 11 : i64} {
  func.func @_cosine_kernel(%arg0: i32, %arg1: memref<2x2x4x128xf32, #tpu.memory_space<vmem>>, %arg2: memref<2x1xf32, #tpu.memory_space<vmem>>) attributes {dimension_semantics = [#tpu.dimension_semantics<arbitrary>], iteration_bounds = array<i64: 1>, scalar_prefetch = 0 : i64, scratch_operands = 0 : i64, tpu.core_type = #tpu.core_type<tc>, window_params = [{pipeline_mode = #tpu.pipeline_mode<synchronous>, transform_indices = @transform_0, window_bounds = array<i64: 2, 2, 4, 128>}, {pipeline_mode = #tpu.pipeline_mode<synchronous>, transform_indices = @transform_1, window_bounds = array<i64: 2, 1>}]} {
    %c0 = arith.constant 0 : index
    %c0_0 = arith.constant 0 : index
    %c0_1 = arith.constant 0 : index
    %c0_2 = arith.constant 0 : index
    %0 = vector.load %arg1[%c0, %c0_0, %c0_1, %c0_2] : memref<2x2x4x128xf32, #tpu.memory_space<vmem>>, vector<2x2x4x128xf32>
    %1 = vector.extract_strided_slice %0 {offsets = [0, 0, 0, 0], sizes = [1, 2, 4, 128], strides = [1, 1, 1, 1]} : vector<2x2x4x128xf32> to vector<1x2x4x128xf32>
    %2 = vector.shape_cast %1 : vector<1x2x4x128xf32> to vector<2x4x128xf32>
    %cst = arith.constant 0.000000e+00 : f32
    %3 = vector.broadcast %cst : f32 to vector<2x4x128xf32>
    %4 = arith.maximumf %2, %3 : vector<2x4x128xf32>
    %5 = vector.extract_strided_slice %0 {offsets = [1, 0, 0, 0], sizes = [1, 2, 4, 128], strides = [1, 1, 1, 1]} : vector<2x2x4x128xf32> to vector<1x2x4x128xf32>
    %6 = vector.shape_cast %5 : vector<1x2x4x128xf32> to vector<2x4x128xf32>
    %cst_3 = arith.constant 0.000000e+00 : f32
    %7 = vector.broadcast %cst_3 : f32 to vector<2x4x128xf32>
    %8 = arith.maximumf %6, %7 : vector<2x4x128xf32>
    %9 = arith.mulf %4, %8 : vector<2x4x128xf32>
    %cst_4 = arith.constant dense<0.000000e+00> : vector<2x4xf32>
    %10 = vector.multi_reduction <add>, %9, %cst_4 [2] : vector<2x4x128xf32> to vector<2x4xf32>
    %cst_5 = arith.constant dense<0.000000e+00> : vector<2xf32>
    %11 = vector.multi_reduction <add>, %10, %cst_5 [1] : vector<2x4xf32> to vector<2xf32>
    %12 = vector.shape_cast %11 : vector<2xf32> to vector<2x1xf32>
    %13 = arith.mulf %4, %4 : vector<2x4x128xf32>
    %cst_6 = arith.constant dense<0.000000e+00> : vector<2x4xf32>
    %14 = vector.multi_reduction <add>, %13, %cst_6 [2] : vector<2x4x128xf32> to vector<2x4xf32>
    %cst_7 = arith.constant dense<0.000000e+00> : vector<2xf32>
    %15 = vector.multi_reduction <add>, %14, %cst_7 [1] : vector<2x4xf32> to vector<2xf32>
    %16 = vector.shape_cast %15 : vector<2xf32> to vector<2x1xf32>
    %17 = arith.mulf %8, %8 : vector<2x4x128xf32>
    %cst_8 = arith.constant dense<0.000000e+00> : vector<2x4xf32>
    %18 = vector.multi_reduction <add>, %17, %cst_8 [2] : vector<2x4x128xf32> to vector<2x4xf32>
    %cst_9 = arith.constant dense<0.000000e+00> : vector<2xf32>
    %19 = vector.multi_reduction <add>, %18, %cst_9 [1] : vector<2x4xf32> to vector<2xf32>
    %20 = vector.shape_cast %19 : vector<2xf32> to vector<2x1xf32>
    %21 = arith.mulf %16, %20 : vector<2x1xf32>
    %cst_10 = arith.constant 1.000000e-16 : f32
    %22 = vector.broadcast %cst_10 : f32 to vector<2x1xf32>
    %23 = arith.maximumf %21, %22 : vector<2x1xf32>
    %24 = math.rsqrt %23 : vector<2x1xf32>
    %25 = arith.mulf %12, %24 : vector<2x1xf32>
    %c0_11 = arith.constant 0 : index
    %c0_12 = arith.constant 0 : index
    %26 = vector.load %arg2[%c0_11, %c0_12] : memref<2x1xf32, #tpu.memory_space<vmem>>, vector<2x1xf32>
    tpu.vector_store %arg2[%c0_11, %c0_12], %25 {strides = array<i32>} : memref<2x1xf32, #tpu.memory_space<vmem>>, vector<2x1xf32>,
    return
  }
  func.func @transform_0(%arg0: i32) -> (i32, i32, i32, i32) {
    %c0_i32 = arith.constant 0 : i32
    %c0_i32_0 = arith.constant 0 : i32
    %c0_i32_1 = arith.constant 0 : i32
    %c0_i32_2 = arith.constant 0 : i32
    %c0_i32_3 = arith.constant 0 : i32
    return %c0_i32, %c0_i32_0, %c0_i32_1, %c0_i32_2 : i32, i32, i32, i32
  }
  func.func @transform_1(%arg0: i32) -> (i32, i32) {
    %c0_i32 = arith.constant 0 : i32
    %c0_i32_0 = arith.constant 0 : i32
    %c0_i32_1 = arith.constant 0 : i32
    return %c0_i32, %c0_i32_0 : i32, i32
  }
}

module attributes {stable_mosaic.version = 11 : i64} {
  func.func @_disc_branch_kernel(%arg0: i32, %arg1: i32, %arg2: memref<1x1x32x4xf32, #tpu.memory_space<vmem>>, %arg3: memref<1x3x4x128xf32, #tpu.memory_space<vmem>>, %arg4: memref<1x3x128x128xf32, #tpu.memory_space<vmem>>, %arg5: memref<1x3x128x128xf32, #tpu.memory_space<vmem>>, %arg6: memref<1x3x128xf32, #tpu.memory_space<vmem>>, %arg7: memref<1x3x128xf32, #tpu.memory_space<vmem>>, %arg8: memref<1x3x128xf32, #tpu.memory_space<vmem>>, %arg9: memref<1x1x16x128xf32, #tpu.memory_space<vmem>>, %arg10: memref<1x1x8x128xf32, #tpu.memory_space<vmem>>, %arg11: memref<1x1x4x128xf32, #tpu.memory_space<vmem>>) attributes {dimension_semantics = [#tpu.dimension_semantics<parallel>, #tpu.dimension_semantics<parallel>], iteration_bounds = array<i64: 2, 2>, scalar_prefetch = 0 : i64, scratch_operands = 0 : i64, tpu.core_type = #tpu.core_type<tc>, window_params = [{transform_indices = @transform_0, window_bounds = array<i64: 1, 1, 32, 4>}, {transform_indices = @transform_1, window_bounds = array<i64: 1, 3, 4, 128>}, {transform_indices = @transform_2, window_bounds = array<i64: 1, 3, 128, 128>}, {transform_indices = @transform_3, window_bounds = array<i64: 1, 3, 128, 128>}, {transform_indices = @transform_4, window_bounds = array<i64: 1, 3, 128>}, {transform_indices = @transform_5, window_bounds = array<i64: 1, 3, 128>}, {transform_indices = @transform_6, window_bounds = array<i64: 1, 3, 128>}, {transform_indices = @transform_7, window_bounds = array<i64: 1, 1, 16, 128>}, {transform_indices = @transform_8, window_bounds = array<i64: 1, 1, 8, 128>}, {transform_indices = @transform_9, window_bounds = array<i64: 1, 1, 4, 128>}]} {
    %c0 = arith.constant 0 : index
    %c0_0 = arith.constant 0 : index
    %c0_1 = arith.constant 0 : index
    %c0_2 = arith.constant 0 : index
    %0 = vector.load %arg2[%c0, %c0_0, %c0_1, %c0_2] : memref<1x1x32x4xf32, #tpu.memory_space<vmem>>, vector<1x1x32x4xf32>
    %1 = vector.shape_cast %0 : vector<1x1x32x4xf32> to vector<32x4xf32>
    %c0_3 = arith.constant 0 : index
    %c0_4 = arith.constant 0 : index
    %c0_5 = arith.constant 0 : index
    %c0_6 = arith.constant 0 : index
    %2 = vector.load %arg3[%c0_3, %c0_4, %c0_5, %c0_6] : memref<1x3x4x128xf32, #tpu.memory_space<vmem>>, vector<1x3x4x128xf32>
    %c0_7 = arith.constant 0 : index
    %c0_8 = arith.constant 0 : index
    %c0_9 = arith.constant 0 : index
    %3 = vector.load %arg6[%c0_7, %c0_8, %c0_9] : memref<1x3x128xf32, #tpu.memory_space<vmem>>, vector<1x3x128xf32>
    %4 = tpu.iota {dimensions = array<i32: 0>} : vector<16x32xi32>
    %5 = tpu.iota {dimensions = array<i32: 1>} : vector<16x32xi32>
    %cst = arith.constant 0.000000e+00 : f32
    %6 = vector.broadcast %cst : f32 to vector<16x128xf32>
    %c2_i32 = arith.constant 2 : i32
    %7 = vector.broadcast %c2_i32 : i32 to vector<16x32xi32>
    %8 = arith.muli %7, %4 : vector<16x32xi32>
    %c-1_i32 = arith.constant -1 : i32
    %9 = vector.broadcast %c-1_i32 : i32 to vector<16x32xi32>
    %10 = arith.addi %8, %9 : vector<16x32xi32>
    %11 = arith.cmpi eq, %5, %10 : vector<16x32xi32>
    %12 = arith.extui %11 : vector<16x32xi1> to vector<16x32xi32>
    %13 = arith.sitofp %12 : vector<16x32xi32> to vector<16x32xf32>
    %cst_10 = arith.constant dense<0.000000e+00> : vector<16x4xf32>
    %14 = tpu.matmul %13, %1, %cst_10 {dimension_numbers = #tpu.dot_dimension_numbers<[1], [0], [0], [1], [0, 0, 1, 1], [], []>} : vector<16x32xf32>, vector<32x4xf32>, vector<16x4xf32> -> vector<16x4xf32>
    %15 = vector.extract_strided_slice %2 {offsets = [0, 0, 0, 0], sizes = [1, 1, 4, 128], strides = [1, 1, 1, 1]} : vector<1x3x4x128xf32> to vector<1x1x4x128xf32>
    %16 = vector.shape_cast %15 : vector<1x1x4x128xf32> to vector<4x128xf32>
    %cst_11 = arith.constant dense<0.000000e+00> : vector<16x128xf32>
    %17 = tpu.matmul %14, %16, %cst_11 {dimension_numbers = #tpu.dot_dimension_numbers<[1], [0], [0], [1], [0, 0, 1, 1], [], []>} : vector<16x4xf32>, vector<4x128xf32>, vector<16x128xf32> -> vector<16x128xf32>
    %18 = arith.addf %6, %17 : vector<16x128xf32>
    %c2_i32_12 = arith.constant 2 : i32
    %19 = vector.broadcast %c2_i32_12 : i32 to vector<16x32xi32>
    %20 = arith.muli %19, %4 : vector<16x32xi32>
    %c0_i32 = arith.constant 0 : i32
    %21 = vector.broadcast %c0_i32 : i32 to vector<16x32xi32>
    %22 = arith.addi %20, %21 : vector<16x32xi32>
    %23 = arith.cmpi eq, %5, %22 : vector<16x32xi32>
    %24 = arith.extui %23 : vector<16x32xi1> to vector<16x32xi32>
    %25 = arith.sitofp %24 : vector<16x32xi32> to vector<16x32xf32>
    %cst_13 = arith.constant dense<0.000000e+00> : vector<16x4xf32>
    %26 = tpu.matmul %25, %1, %cst_13 {dimension_numbers = #tpu.dot_dimension_numbers<[1], [0], [0], [1], [0, 0, 1, 1], [], []>} : vector<16x32xf32>, vector<32x4xf32>, vector<16x4xf32> -> vector<16x4xf32>
    %27 = vector.extract_strided_slice %2 {offsets = [0, 1, 0, 0], sizes = [1, 1, 4, 128], strides = [1, 1, 1, 1]} : vector<1x3x4x128xf32> to vector<1x1x4x128xf32>
    %28 = vector.shape_cast %27 : vector<1x1x4x128xf32> to vector<4x128xf32>
    %cst_14 = arith.constant dense<0.000000e+00> : vector<16x128xf32>
    %29 = tpu.matmul %26, %28, %cst_14 {dimension_numbers = #tpu.dot_dimension_numbers<[1], [0], [0], [1], [0, 0, 1, 1], [], []>} : vector<16x4xf32>, vector<4x128xf32>, vector<16x128xf32> -> vector<16x128xf32>
    %30 = arith.addf %18, %29 : vector<16x128xf32>
    %c2_i32_15 = arith.constant 2 : i32
    %31 = vector.broadcast %c2_i32_15 : i32 to vector<16x32xi32>
    %32 = arith.muli %31, %4 : vector<16x32xi32>
    %c1_i32 = arith.constant 1 : i32
    %33 = vector.broadcast %c1_i32 : i32 to vector<16x32xi32>
    %34 = arith.addi %32, %33 : vector<16x32xi32>
    %35 = arith.cmpi eq, %5, %34 : vector<16x32xi32>
    %36 = arith.extui %35 : vector<16x32xi1> to vector<16x32xi32>
    %37 = arith.sitofp %36 : vector<16x32xi32> to vector<16x32xf32>
    %cst_16 = arith.constant dense<0.000000e+00> : vector<16x4xf32>
    %38 = tpu.matmul %37, %1, %cst_16 {dimension_numbers = #tpu.dot_dimension_numbers<[1], [0], [0], [1], [0, 0, 1, 1], [], []>} : vector<16x32xf32>, vector<32x4xf32>, vector<16x4xf32> -> vector<16x4xf32>
    %39 = vector.extract_strided_slice %2 {offsets = [0, 2, 0, 0], sizes = [1, 1, 4, 128], strides = [1, 1, 1, 1]} : vector<1x3x4x128xf32> to vector<1x1x4x128xf32>
    %40 = vector.shape_cast %39 : vector<1x1x4x128xf32> to vector<4x128xf32>
    %cst_17 = arith.constant dense<0.000000e+00> : vector<16x128xf32>
    %41 = tpu.matmul %38, %40, %cst_17 {dimension_numbers = #tpu.dot_dimension_numbers<[1], [0], [0], [1], [0, 0, 1, 1], [], []>} : vector<16x4xf32>, vector<4x128xf32>, vector<16x128xf32> -> vector<16x128xf32>
    %42 = arith.addf %30, %41 : vector<16x128xf32>
    %43 = vector.extract_strided_slice %3 {offsets = [0, 0, 0], sizes = [1, 1, 128], strides = [1, 1, 1]} : vector<1x3x128xf32> to vector<1x1x128xf32>
    %44 = vector.shape_cast %43 : vector<1x1x128xf32> to vector<1x128xf32>
    %45 = vector.broadcast %44 : vector<1x128xf32> to vector<16x128xf32>
    %46 = arith.addf %42, %45 : vector<16x128xf32>
    %cst_18 = arith.constant 0.000000e+00 : f32
    %47 = vector.broadcast %cst_18 : f32 to vector<16x128xf32>
    %48 = arith.cmpf ogt, %46, %47 : vector<16x128xf32>
    %cst_19 = arith.constant 2.000000e-01 : f32
    %49 = vector.broadcast %cst_19 : f32 to vector<16x128xf32>
    %50 = arith.mulf %49, %46 : vector<16x128xf32>
    %51 = arith.select %48, %46, %50 : vector<16x128xi1>, vector<16x128xf32>
    %52 = vector.extract_strided_slice %3 {offsets = [0, 1, 0], sizes = [1, 1, 128], strides = [1, 1, 1]} : vector<1x3x128xf32> to vector<1x1x128xf32>
    %53 = vector.shape_cast %52 : vector<1x1x128xf32> to vector<1x128xf32>
    %54 = vector.broadcast %53 : vector<1x128xf32> to vector<16x128xf32>
    %55 = arith.mulf %51, %54 : vector<16x128xf32>
    %56 = vector.extract_strided_slice %3 {offsets = [0, 2, 0], sizes = [1, 1, 128], strides = [1, 1, 1]} : vector<1x3x128xf32> to vector<1x1x128xf32>
    %57 = vector.shape_cast %56 : vector<1x1x128xf32> to vector<1x128xf32>
    %58 = vector.broadcast %57 : vector<1x128xf32> to vector<16x128xf32>
    %59 = arith.addf %55, %58 : vector<16x128xf32>
    %60 = vector.shape_cast %59 : vector<16x128xf32> to vector<1x1x16x128xf32>
    %c0_20 = arith.constant 0 : index
    %c0_21 = arith.constant 0 : index
    %c0_22 = arith.constant 0 : index
    %c0_23 = arith.constant 0 : index
    %61 = vector.load %arg9[%c0_20, %c0_21, %c0_22, %c0_23] : memref<1x1x16x128xf32, #tpu.memory_space<vmem>>, vector<1x1x16x128xf32>
    tpu.vector_store %arg9[%c0_20, %c0_21, %c0_22, %c0_23], %60 {strides = array<i32>} : memref<1x1x16x128xf32, #tpu.memory_space<vmem>>, vector<1x1x16x128xf32>,
    %c0_24 = arith.constant 0 : index
    %c0_25 = arith.constant 0 : index
    %c0_26 = arith.constant 0 : index
    %c0_27 = arith.constant 0 : index
    %62 = vector.load %arg4[%c0_24, %c0_25, %c0_26, %c0_27] : memref<1x3x128x128xf32, #tpu.memory_space<vmem>>, vector<1x3x128x128xf32>
    %c0_28 = arith.constant 0 : index
    %c0_29 = arith.constant 0 : index
    %c0_30 = arith.constant 0 : index
    %63 = vector.load %arg7[%c0_28, %c0_29, %c0_30] : memref<1x3x128xf32, #tpu.memory_space<vmem>>, vector<1x3x128xf32>
    %64 = tpu.iota {dimensions = array<i32: 0>} : vector<8x16xi32>
    %65 = tpu.iota {dimensions = array<i32: 1>} : vector<8x16xi32>
    %cst_31 = arith.constant 0.000000e+00 : f32
    %66 = vector.broadcast %cst_31 : f32 to vector<8x128xf32>
    %c2_i32_32 = arith.constant 2 : i32
    %67 = vector.broadcast %c2_i32_32 : i32 to vector<8x16xi32>
    %68 = arith.muli %67, %64 : vector<8x16xi32>
    %c-1_i32_33 = arith.constant -1 : i32
    %69 = vector.broadcast %c-1_i32_33 : i32 to vector<8x16xi32>
    %70 = arith.addi %68, %69 : vector<8x16xi32>
    %71 = arith.cmpi eq, %65, %70 : vector<8x16xi32>
    %72 = arith.extui %71 : vector<8x16xi1> to vector<8x16xi32>
    %73 = arith.sitofp %72 : vector<8x16xi32> to vector<8x16xf32>
    %cst_34 = arith.constant dense<0.000000e+00> : vector<8x128xf32>
    %74 = tpu.matmul %73, %59, %cst_34 {dimension_numbers = #tpu.dot_dimension_numbers<[1], [0], [0], [1], [0, 0, 1, 1], [], []>} : vector<8x16xf32>, vector<16x128xf32>, vector<8x128xf32> -> vector<8x128xf32>
    %75 = vector.extract_strided_slice %62 {offsets = [0, 0, 0, 0], sizes = [1, 1, 128, 128], strides = [1, 1, 1, 1]} : vector<1x3x128x128xf32> to vector<1x1x128x128xf32>
    %76 = vector.shape_cast %75 : vector<1x1x128x128xf32> to vector<128x128xf32>
    %cst_35 = arith.constant dense<0.000000e+00> : vector<8x128xf32>
    %77 = tpu.matmul %74, %76, %cst_35 {dimension_numbers = #tpu.dot_dimension_numbers<[1], [0], [0], [1], [0, 0, 1, 1], [], []>} : vector<8x128xf32>, vector<128x128xf32>, vector<8x128xf32> -> vector<8x128xf32>
    %78 = arith.addf %66, %77 : vector<8x128xf32>
    %c2_i32_36 = arith.constant 2 : i32
    %79 = vector.broadcast %c2_i32_36 : i32 to vector<8x16xi32>
    %80 = arith.muli %79, %64 : vector<8x16xi32>
    %c0_i32_37 = arith.constant 0 : i32
    %81 = vector.broadcast %c0_i32_37 : i32 to vector<8x16xi32>
    %82 = arith.addi %80, %81 : vector<8x16xi32>
    %83 = arith.cmpi eq, %65, %82 : vector<8x16xi32>
    %84 = arith.extui %83 : vector<8x16xi1> to vector<8x16xi32>
    %85 = arith.sitofp %84 : vector<8x16xi32> to vector<8x16xf32>
    %cst_38 = arith.constant dense<0.000000e+00> : vector<8x128xf32>
    %86 = tpu.matmul %85, %59, %cst_38 {dimension_numbers = #tpu.dot_dimension_numbers<[1], [0], [0], [1], [0, 0, 1, 1], [], []>} : vector<8x16xf32>, vector<16x128xf32>, vector<8x128xf32> -> vector<8x128xf32>
    %87 = vector.extract_strided_slice %62 {offsets = [0, 1, 0, 0], sizes = [1, 1, 128, 128], strides = [1, 1, 1, 1]} : vector<1x3x128x128xf32> to vector<1x1x128x128xf32>
    %88 = vector.shape_cast %87 : vector<1x1x128x128xf32> to vector<128x128xf32>
    %cst_39 = arith.constant dense<0.000000e+00> : vector<8x128xf32>
    %89 = tpu.matmul %86, %88, %cst_39 {dimension_numbers = #tpu.dot_dimension_numbers<[1], [0], [0], [1], [0, 0, 1, 1], [], []>} : vector<8x128xf32>, vector<128x128xf32>, vector<8x128xf32> -> vector<8x128xf32>
    %90 = arith.addf %78, %89 : vector<8x128xf32>
    %c2_i32_40 = arith.constant 2 : i32
    %91 = vector.broadcast %c2_i32_40 : i32 to vector<8x16xi32>
    %92 = arith.muli %91, %64 : vector<8x16xi32>
    %c1_i32_41 = arith.constant 1 : i32
    %93 = vector.broadcast %c1_i32_41 : i32 to vector<8x16xi32>
    %94 = arith.addi %92, %93 : vector<8x16xi32>
    %95 = arith.cmpi eq, %65, %94 : vector<8x16xi32>
    %96 = arith.extui %95 : vector<8x16xi1> to vector<8x16xi32>
    %97 = arith.sitofp %96 : vector<8x16xi32> to vector<8x16xf32>
    %cst_42 = arith.constant dense<0.000000e+00> : vector<8x128xf32>
    %98 = tpu.matmul %97, %59, %cst_42 {dimension_numbers = #tpu.dot_dimension_numbers<[1], [0], [0], [1], [0, 0, 1, 1], [], []>} : vector<8x16xf32>, vector<16x128xf32>, vector<8x128xf32> -> vector<8x128xf32>
    %99 = vector.extract_strided_slice %62 {offsets = [0, 2, 0, 0], sizes = [1, 1, 128, 128], strides = [1, 1, 1, 1]} : vector<1x3x128x128xf32> to vector<1x1x128x128xf32>
    %100 = vector.shape_cast %99 : vector<1x1x128x128xf32> to vector<128x128xf32>
    %cst_43 = arith.constant dense<0.000000e+00> : vector<8x128xf32>
    %101 = tpu.matmul %98, %100, %cst_43 {dimension_numbers = #tpu.dot_dimension_numbers<[1], [0], [0], [1], [0, 0, 1, 1], [], []>} : vector<8x128xf32>, vector<128x128xf32>, vector<8x128xf32> -> vector<8x128xf32>
    %102 = arith.addf %90, %101 : vector<8x128xf32>
    %103 = vector.extract_strided_slice %63 {offsets = [0, 0, 0], sizes = [1, 1, 128], strides = [1, 1, 1]} : vector<1x3x128xf32> to vector<1x1x128xf32>
    %104 = vector.shape_cast %103 : vector<1x1x128xf32> to vector<1x128xf32>
    %105 = vector.broadcast %104 : vector<1x128xf32> to vector<8x128xf32>
    %106 = arith.addf %102, %105 : vector<8x128xf32>
    %cst_44 = arith.constant 0.000000e+00 : f32
    %107 = vector.broadcast %cst_44 : f32 to vector<8x128xf32>
    %108 = arith.cmpf ogt, %106, %107 : vector<8x128xf32>
    %cst_45 = arith.constant 2.000000e-01 : f32
    %109 = vector.broadcast %cst_45 : f32 to vector<8x128xf32>
    %110 = arith.mulf %109, %106 : vector<8x128xf32>
    %111 = arith.select %108, %106, %110 : vector<8x128xi1>, vector<8x128xf32>
    %112 = vector.extract_strided_slice %63 {offsets = [0, 1, 0], sizes = [1, 1, 128], strides = [1, 1, 1]} : vector<1x3x128xf32> to vector<1x1x128xf32>
    %113 = vector.shape_cast %112 : vector<1x1x128xf32> to vector<1x128xf32>
    %114 = vector.broadcast %113 : vector<1x128xf32> to vector<8x128xf32>
    %115 = arith.mulf %111, %114 : vector<8x128xf32>
    %116 = vector.extract_strided_slice %63 {offsets = [0, 2, 0], sizes = [1, 1, 128], strides = [1, 1, 1]} : vector<1x3x128xf32> to vector<1x1x128xf32>
    %117 = vector.shape_cast %116 : vector<1x1x128xf32> to vector<1x128xf32>
    %118 = vector.broadcast %117 : vector<1x128xf32> to vector<8x128xf32>
    %119 = arith.addf %115, %118 : vector<8x128xf32>
    %120 = vector.shape_cast %119 : vector<8x128xf32> to vector<1x1x8x128xf32>
    %c0_46 = arith.constant 0 : index
    %c0_47 = arith.constant 0 : index
    %c0_48 = arith.constant 0 : index
    %c0_49 = arith.constant 0 : index
    %121 = vector.load %arg10[%c0_46, %c0_47, %c0_48, %c0_49] : memref<1x1x8x128xf32, #tpu.memory_space<vmem>>, vector<1x1x8x128xf32>
    tpu.vector_store %arg10[%c0_46, %c0_47, %c0_48, %c0_49], %120 {strides = array<i32>} : memref<1x1x8x128xf32, #tpu.memory_space<vmem>>, vector<1x1x8x128xf32>,
    %c0_50 = arith.constant 0 : index
    %c0_51 = arith.constant 0 : index
    %c0_52 = arith.constant 0 : index
    %c0_53 = arith.constant 0 : index
    %122 = vector.load %arg5[%c0_50, %c0_51, %c0_52, %c0_53] : memref<1x3x128x128xf32, #tpu.memory_space<vmem>>, vector<1x3x128x128xf32>
    %c0_54 = arith.constant 0 : index
    %c0_55 = arith.constant 0 : index
    %c0_56 = arith.constant 0 : index
    %123 = vector.load %arg8[%c0_54, %c0_55, %c0_56] : memref<1x3x128xf32, #tpu.memory_space<vmem>>, vector<1x3x128xf32>
    %124 = tpu.iota {dimensions = array<i32: 0>} : vector<4x8xi32>
    %125 = tpu.iota {dimensions = array<i32: 1>} : vector<4x8xi32>
    %cst_57 = arith.constant 0.000000e+00 : f32
    %126 = vector.broadcast %cst_57 : f32 to vector<4x128xf32>
    %c2_i32_58 = arith.constant 2 : i32
    %127 = vector.broadcast %c2_i32_58 : i32 to vector<4x8xi32>
    %128 = arith.muli %127, %124 : vector<4x8xi32>
    %c-1_i32_59 = arith.constant -1 : i32
    %129 = vector.broadcast %c-1_i32_59 : i32 to vector<4x8xi32>
    %130 = arith.addi %128, %129 : vector<4x8xi32>
    %131 = arith.cmpi eq, %125, %130 : vector<4x8xi32>
    %132 = arith.extui %131 : vector<4x8xi1> to vector<4x8xi32>
    %133 = arith.sitofp %132 : vector<4x8xi32> to vector<4x8xf32>
    %cst_60 = arith.constant dense<0.000000e+00> : vector<4x128xf32>
    %134 = tpu.matmul %133, %119, %cst_60 {dimension_numbers = #tpu.dot_dimension_numbers<[1], [0], [0], [1], [0, 0, 1, 1], [], []>} : vector<4x8xf32>, vector<8x128xf32>, vector<4x128xf32> -> vector<4x128xf32>
    %135 = vector.extract_strided_slice %122 {offsets = [0, 0, 0, 0], sizes = [1, 1, 128, 128], strides = [1, 1, 1, 1]} : vector<1x3x128x128xf32> to vector<1x1x128x128xf32>
    %136 = vector.shape_cast %135 : vector<1x1x128x128xf32> to vector<128x128xf32>
    %cst_61 = arith.constant dense<0.000000e+00> : vector<4x128xf32>
    %137 = tpu.matmul %134, %136, %cst_61 {dimension_numbers = #tpu.dot_dimension_numbers<[1], [0], [0], [1], [0, 0, 1, 1], [], []>} : vector<4x128xf32>, vector<128x128xf32>, vector<4x128xf32> -> vector<4x128xf32>
    %138 = arith.addf %126, %137 : vector<4x128xf32>
    %c2_i32_62 = arith.constant 2 : i32
    %139 = vector.broadcast %c2_i32_62 : i32 to vector<4x8xi32>
    %140 = arith.muli %139, %124 : vector<4x8xi32>
    %c0_i32_63 = arith.constant 0 : i32
    %141 = vector.broadcast %c0_i32_63 : i32 to vector<4x8xi32>
    %142 = arith.addi %140, %141 : vector<4x8xi32>
    %143 = arith.cmpi eq, %125, %142 : vector<4x8xi32>
    %144 = arith.extui %143 : vector<4x8xi1> to vector<4x8xi32>
    %145 = arith.sitofp %144 : vector<4x8xi32> to vector<4x8xf32>
    %cst_64 = arith.constant dense<0.000000e+00> : vector<4x128xf32>
    %146 = tpu.matmul %145, %119, %cst_64 {dimension_numbers = #tpu.dot_dimension_numbers<[1], [0], [0], [1], [0, 0, 1, 1], [], []>} : vector<4x8xf32>, vector<8x128xf32>, vector<4x128xf32> -> vector<4x128xf32>
    %147 = vector.extract_strided_slice %122 {offsets = [0, 1, 0, 0], sizes = [1, 1, 128, 128], strides = [1, 1, 1, 1]} : vector<1x3x128x128xf32> to vector<1x1x128x128xf32>
    %148 = vector.shape_cast %147 : vector<1x1x128x128xf32> to vector<128x128xf32>
    %cst_65 = arith.constant dense<0.000000e+00> : vector<4x128xf32>
    %149 = tpu.matmul %146, %148, %cst_65 {dimension_numbers = #tpu.dot_dimension_numbers<[1], [0], [0], [1], [0, 0, 1, 1], [], []>} : vector<4x128xf32>, vector<128x128xf32>, vector<4x128xf32> -> vector<4x128xf32>
    %150 = arith.addf %138, %149 : vector<4x128xf32>
    %c2_i32_66 = arith.constant 2 : i32
    %151 = vector.broadcast %c2_i32_66 : i32 to vector<4x8xi32>
    %152 = arith.muli %151, %124 : vector<4x8xi32>
    %c1_i32_67 = arith.constant 1 : i32
    %153 = vector.broadcast %c1_i32_67 : i32 to vector<4x8xi32>
    %154 = arith.addi %152, %153 : vector<4x8xi32>
    %155 = arith.cmpi eq, %125, %154 : vector<4x8xi32>
    %156 = arith.extui %155 : vector<4x8xi1> to vector<4x8xi32>
    %157 = arith.sitofp %156 : vector<4x8xi32> to vector<4x8xf32>
    %cst_68 = arith.constant dense<0.000000e+00> : vector<4x128xf32>
    %158 = tpu.matmul %157, %119, %cst_68 {dimension_numbers = #tpu.dot_dimension_numbers<[1], [0], [0], [1], [0, 0, 1, 1], [], []>} : vector<4x8xf32>, vector<8x128xf32>, vector<4x128xf32> -> vector<4x128xf32>
    %159 = vector.extract_strided_slice %122 {offsets = [0, 2, 0, 0], sizes = [1, 1, 128, 128], strides = [1, 1, 1, 1]} : vector<1x3x128x128xf32> to vector<1x1x128x128xf32>
    %160 = vector.shape_cast %159 : vector<1x1x128x128xf32> to vector<128x128xf32>
    %cst_69 = arith.constant dense<0.000000e+00> : vector<4x128xf32>
    %161 = tpu.matmul %158, %160, %cst_69 {dimension_numbers = #tpu.dot_dimension_numbers<[1], [0], [0], [1], [0, 0, 1, 1], [], []>} : vector<4x128xf32>, vector<128x128xf32>, vector<4x128xf32> -> vector<4x128xf32>
    %162 = arith.addf %150, %161 : vector<4x128xf32>
    %163 = vector.extract_strided_slice %123 {offsets = [0, 0, 0], sizes = [1, 1, 128], strides = [1, 1, 1]} : vector<1x3x128xf32> to vector<1x1x128xf32>
    %164 = vector.shape_cast %163 : vector<1x1x128xf32> to vector<1x128xf32>
    %165 = vector.broadcast %164 : vector<1x128xf32> to vector<4x128xf32>
    %166 = arith.addf %162, %165 : vector<4x128xf32>
    %cst_70 = arith.constant 0.000000e+00 : f32
    %167 = vector.broadcast %cst_70 : f32 to vector<4x128xf32>
    %168 = arith.cmpf ogt, %166, %167 : vector<4x128xf32>
    %cst_71 = arith.constant 2.000000e-01 : f32
    %169 = vector.broadcast %cst_71 : f32 to vector<4x128xf32>
    %170 = arith.mulf %169, %166 : vector<4x128xf32>
    %171 = arith.select %168, %166, %170 : vector<4x128xi1>, vector<4x128xf32>
    %172 = vector.extract_strided_slice %123 {offsets = [0, 1, 0], sizes = [1, 1, 128], strides = [1, 1, 1]} : vector<1x3x128xf32> to vector<1x1x128xf32>
    %173 = vector.shape_cast %172 : vector<1x1x128xf32> to vector<1x128xf32>
    %174 = vector.broadcast %173 : vector<1x128xf32> to vector<4x128xf32>
    %175 = arith.mulf %171, %174 : vector<4x128xf32>
    %176 = vector.extract_strided_slice %123 {offsets = [0, 2, 0], sizes = [1, 1, 128], strides = [1, 1, 1]} : vector<1x3x128xf32> to vector<1x1x128xf32>
    %177 = vector.shape_cast %176 : vector<1x1x128xf32> to vector<1x128xf32>
    %178 = vector.broadcast %177 : vector<1x128xf32> to vector<4x128xf32>
    %179 = arith.addf %175, %178 : vector<4x128xf32>
    %180 = vector.shape_cast %179 : vector<4x128xf32> to vector<1x1x4x128xf32>
    %c0_72 = arith.constant 0 : index
    %c0_73 = arith.constant 0 : index
    %c0_74 = arith.constant 0 : index
    %c0_75 = arith.constant 0 : index
    %181 = vector.load %arg11[%c0_72, %c0_73, %c0_74, %c0_75] : memref<1x1x4x128xf32, #tpu.memory_space<vmem>>, vector<1x1x4x128xf32>
    tpu.vector_store %arg11[%c0_72, %c0_73, %c0_74, %c0_75], %180 {strides = array<i32>} : memref<1x1x4x128xf32, #tpu.memory_space<vmem>>, vector<1x1x4x128xf32>,
    return
  }
  func.func @transform_0(%arg0: i32, %arg1: i32) -> (i32, i32, i32, i32) {
    %c0_i32 = arith.constant 0 : i32
    %c0_i32_0 = arith.constant 0 : i32
    %c0_i32_1 = arith.constant 0 : i32
    return %arg0, %arg1, %c0_i32, %c0_i32_0 : i32, i32, i32, i32
  }
  func.func @transform_1(%arg0: i32, %arg1: i32) -> (i32, i32, i32, i32) {
    %c0_i32 = arith.constant 0 : i32
    %c0_i32_0 = arith.constant 0 : i32
    %c0_i32_1 = arith.constant 0 : i32
    %c0_i32_2 = arith.constant 0 : i32
    return %arg0, %c0_i32, %c0_i32_0, %c0_i32_1 : i32, i32, i32, i32
  }
  func.func @transform_2(%arg0: i32, %arg1: i32) -> (i32, i32, i32, i32) {
    %c0_i32 = arith.constant 0 : i32
    %c0_i32_0 = arith.constant 0 : i32
    %c0_i32_1 = arith.constant 0 : i32
    %c0_i32_2 = arith.constant 0 : i32
    return %arg0, %c0_i32, %c0_i32_0, %c0_i32_1 : i32, i32, i32, i32
  }
  func.func @transform_3(%arg0: i32, %arg1: i32) -> (i32, i32, i32, i32) {
    %c0_i32 = arith.constant 0 : i32
    %c0_i32_0 = arith.constant 0 : i32
    %c0_i32_1 = arith.constant 0 : i32
    %c0_i32_2 = arith.constant 0 : i32
    return %arg0, %c0_i32, %c0_i32_0, %c0_i32_1 : i32, i32, i32, i32
  }
  func.func @transform_4(%arg0: i32, %arg1: i32) -> (i32, i32, i32) {
    %c0_i32 = arith.constant 0 : i32
    %c0_i32_0 = arith.constant 0 : i32
    %c0_i32_1 = arith.constant 0 : i32
    return %arg0, %c0_i32, %c0_i32_0 : i32, i32, i32
  }
  func.func @transform_5(%arg0: i32, %arg1: i32) -> (i32, i32, i32) {
    %c0_i32 = arith.constant 0 : i32
    %c0_i32_0 = arith.constant 0 : i32
    %c0_i32_1 = arith.constant 0 : i32
    return %arg0, %c0_i32, %c0_i32_0 : i32, i32, i32
  }
  func.func @transform_6(%arg0: i32, %arg1: i32) -> (i32, i32, i32) {
    %c0_i32 = arith.constant 0 : i32
    %c0_i32_0 = arith.constant 0 : i32
    %c0_i32_1 = arith.constant 0 : i32
    return %arg0, %c0_i32, %c0_i32_0 : i32, i32, i32
  }
  func.func @transform_7(%arg0: i32, %arg1: i32) -> (i32, i32, i32, i32) {
    %c0_i32 = arith.constant 0 : i32
    %c0_i32_0 = arith.constant 0 : i32
    %c0_i32_1 = arith.constant 0 : i32
    return %arg0, %arg1, %c0_i32, %c0_i32_0 : i32, i32, i32, i32
  }
  func.func @transform_8(%arg0: i32, %arg1: i32) -> (i32, i32, i32, i32) {
    %c0_i32 = arith.constant 0 : i32
    %c0_i32_0 = arith.constant 0 : i32
    %c0_i32_1 = arith.constant 0 : i32
    return %arg0, %arg1, %c0_i32, %c0_i32_0 : i32, i32, i32, i32
  }
  func.func @transform_9(%arg0: i32, %arg1: i32) -> (i32, i32, i32, i32) {
    %c0_i32 = arith.constant 0 : i32
    %c0_i32_0 = arith.constant 0 : i32
    %c0_i32_1 = arith.constant 0 : i32
    return %arg0, %arg1, %c0_i32, %c0_i32_0 : i32, i32, i32, i32
  }
}

</mosaic_0001>

<llo_original>
// kernel: cosine_discriminator_forward.3
$region0: #{cosine_discriminator_forward.3}
  #allocation0 [shape = 'u32[]', space=smem, size = 0x4, offset = 0x4, fixed_abs, tag = 'smem constant byte address 0x4 - core index']
  #allocation1 [shape = 'u32[144,128]{1,0:T(1,128)}', space=vmem, size = 0x12000, scoped, tag = 'internal scratch']
  %s0 = inlined_call_operand.vmem [shape: f32[2,2,4,128], index: 0, kind: input, shape index: {}]
  %s1 = inlined_call_operand.vmem [shape: f32[2,1], index: 1, kind: output, shape index: {}]
  %s2 = sld [smem:[#allocation0]]
  $region14: #{cosine_discriminator_forward.3} parent=0
    _
  %s4 = ssub.s32 1, %s2
  %s5 = scalar_select 0, %s4, %s2
  // Predicated region
  $region2: #{cosine_discriminator_forward.3} parent=0 // pred_check
    _
  $region3: #{cosine_discriminator_forward.3} parent=0 // pred_check_branch
    %7 = sbr.rel (0) target = $region5
  $region4: #{cosine_discriminator_forward.3} parent=0 // pred_region
    _
  $region5: #{cosine_discriminator_forward.3} parent=0 // pred_fallthru
    _
  %v8 = vld [vmem:[%s0] sm:$0xf]
  %v9 = vld [vmem:[%s0 + $0x4] sm:$0xf]
  %v10 = vld [vmem:[%s0 + $0x8] sm:$0xf]
  %v11 = vld [vmem:[%s0 + $0xc] sm:$0xf]
  %v12 = vmax.f32 %v8, 0.0
  %v13 = vmax.f32 %v9, 0.0
  %v14 = vmax.f32 %v10, 0.0
  %v15 = vmax.f32 %v11, 0.0
  %v16 = vmul.f32 %v12, %v14
  %v17 = vmul.f32 %v13, %v15
  %vm18 = vcmask 1043456
  %v19 = vsel %vm18, %v16, 0.0
  %20 = vadd.xlane.f32.xlu0 %v19
  %v21 = vpop.xlane.xlu0 %20
  %v22 = vsel %vm18, %v17, 0.0
  %23 = vadd.xlane.f32.xlu0 %v22
  %v24 = vpop.xlane.xlu0 %23
  %v27 = vlaneseq
  %v28 = vand.u32 %v27, 127
  %v29 = vlaneseq
  %v30 = vshrl.u32 %v29, 7
  %v31 = vsub.s32 %v28, %v30
  %v32 = vrot.slane %v21, %v31
  %v33 = vlaneseq
  %v34 = vshrl.u32 %v33, 7
  %v35 = vsub.s32 %v28, %v34
  %v36 = vrot.slane %v24, %v35
  %vm37 = vcmask 1041409
  %v38 = vsel %vm37, %v36, %v32
  %vm40 = vcmask 25600
  %v41 = vsel %vm40, %v38, 0.0
  %42 = vadd.xlane.f32.xlu0 %v41
  %v43 = vpop.xlane.xlu0 %42
  %v44 = vmul.f32 %v12, %v12
  %v45 = vmul.f32 %v13, %v13
  %v46 = vsel %vm18, %v44, 0.0
  %47 = vadd.xlane.f32.xlu0 %v46
  %v48 = vpop.xlane.xlu0 %47
  %v49 = vsel %vm18, %v45, 0.0
  %50 = vadd.xlane.f32.xlu0 %v49
  %v51 = vpop.xlane.xlu0 %50
  %v54 = vlaneseq
  %v55 = vshrl.u32 %v54, 7
  %v56 = vsub.s32 %v28, %v55
  %v57 = vrot.slane %v48, %v56
  %v58 = vlaneseq
  %v59 = vshrl.u32 %v58, 7
  %v60 = vsub.s32 %v28, %v59
  %v61 = vrot.slane %v51, %v60
  %v62 = vsel %vm37, %v61, %v57
  %v64 = vsel %vm40, %v62, 0.0
  %65 = vadd.xlane.f32.xlu0 %v64
  %v66 = vpop.xlane.xlu0 %65
  %v67 = vmul.f32 %v14, %v14
  %v68 = vmul.f32 %v15, %v15
  %v69 = vsel %vm18, %v67, 0.0
  %70 = vadd.xlane.f32.xlu0 %v69
  %v71 = vpop.xlane.xlu0 %70
  %v72 = vsel %vm18, %v68, 0.0
  %73 = vadd.xlane.f32.xlu0 %v72
  %v74 = vpop.xlane.xlu0 %73
  %v77 = vlaneseq
  %v78 = vshrl.u32 %v77, 7
  %v79 = vsub.s32 %v28, %v78
  %v80 = vrot.slane %v71, %v79
  %v81 = vlaneseq
  %v82 = vshrl.u32 %v81, 7
  %v83 = vsub.s32 %v28, %v82
  %v84 = vrot.slane %v74, %v83
  %v85 = vsel %vm37, %v84, %v80
  %v87 = vsel %vm40, %v85, 0.0
  %88 = vadd.xlane.f32.xlu0 %v87
  %v89 = vpop.xlane.xlu0 %88
  %v90 = vmul.f32 %v66, %v89
  %v91 = vmax.f32 %v90, 1e-16
  %v92 = vrsqrt.pop %v91
  %v93 = vmul.f32 %v43, %v92
  %vm94 = vcmask 1024
  %95 = vst.msk [vmem:[%s1] sm:$0x3] %vm94, %v93
  // Predicated region
  $region6: #{cosine_discriminator_forward.3} parent=0 // pred_check
    _
  $region7: #{cosine_discriminator_forward.3} parent=0 // pred_check_branch
    %97 = sbr.rel (0) target = $region9
  $region8: #{cosine_discriminator_forward.3} parent=0 // pred_region
    _
  $region9: #{cosine_discriminator_forward.3} parent=0 // pred_fallthru
    _
  // Predicated region
  $region10: #{cosine_discriminator_forward.3} parent=0 // pred_check
    _
  $region11: #{cosine_discriminator_forward.3} parent=0 // pred_check_branch
    %99 = sbr.rel (0) target = $region13
  $region12: #{cosine_discriminator_forward.3} parent=0 // pred_region
    _
  $region13: #{cosine_discriminator_forward.3} parent=0 // pred_fallthru
    _

// kernel: cosine_discriminator_forward.2
$region0: #{cosine_discriminator_forward.2}
  #allocation0 [shape = 'u32[]', space=smem, size = 0x4, offset = 0x4, fixed_abs, tag = 'smem constant byte address 0x4 - core index']
  #allocation1 [shape = 'u32[144,128]{1,0:T(1,128)}', space=vmem, size = 0x12000, scoped, tag = 'internal scratch']
  %s0 = inlined_call_operand.vmem [shape: f32[2,2,32,4], index: 0, kind: input, shape index: {}]
  %s1 = inlined_call_operand.vmem [shape: f32[2,3,4,128], index: 1, kind: input, shape index: {}]
  %s2 = inlined_call_operand.hbm [shape: f32[2,3,128,128], index: 2, kind: input, shape index: {}]
  %s3 = inlined_call_operand.hbm [shape: f32[2,3,128,128], index: 3, kind: input, shape index: {}]
  %s4 = inlined_call_operand.vmem [shape: f32[2,3,128], index: 4, kind: input, shape index: {}]
  %s5 = inlined_call_operand.vmem [shape: f32[2,3,128], index: 5, kind: input, shape index: {}]
  %s6 = inlined_call_operand.vmem [shape: f32[2,3,128], index: 6, kind: input, shape index: {}]
  %s7 = inlined_call_operand.vmem [shape: f32[2,2,16,128], index: 7, kind: output, shape index: {0}]
  %s8 = inlined_call_operand.vmem [shape: f32[2,2,8,128], index: 8, kind: output, shape index: {1}]
  %s9 = inlined_call_operand.vmem [shape: f32[2,2,4,128], index: 9, kind: output, shape index: {2}]
  %10 = xla_tuple %s7, %s8, %s9
  %s11 = sld [smem:[#allocation0]]
  $region85: #{cosine_discriminator_forward.2} parent=0
    _
  %s13 = ssub.s32 1, %s11
  %s14 = scalar_select 0, %s13, %s11
  $region1: #{cosine_discriminator_forward.2} parent=0
    #allocation2 [shape = 'u8[393216]{0}', space=vmem, size = 0x60000, scoped, tag = 'input window, operand 2']
    #allocation3 [shape = 's32[2]{0}', space=sflag, size = 0x8, scoped, tag = 'scoped memory for cosine_discriminator_forward.2']
    #allocation4 [shape = 'u8[393216]{0}', space=vmem, size = 0x60000, scoped, tag = 'input window, operand 3']
    #allocation5 [shape = 's32[2]{0}', space=sflag, size = 0x8, scoped, tag = 'scoped memory for cosine_discriminator_forward.2']
    %15 = vsyncpa [#allocation3], 0
    %s16 = scalar_lea.sflag [#allocation3], 1
    %17 = vsyncpa %s16, 0
    %18 = vsyncpa [#allocation5], 0
    %s19 = scalar_lea.sflag [#allocation5], 1
    %20 = vsyncpa %s19, 0
    loop: start=0, step=1, limit=6
    $region2: #{cosine_discriminator_forward.2} parent=1 // loop_pre_header
      _
    $region3: #{cosine_discriminator_forward.2} parent=1 // loop_header
      %s22 = sphi 0, %s26
      %p23 = scmp.ge.s32.totalorder %s22, 6
      %s29 = sphi 0, %s41
      %s30 = sphi 0, %s37
      %s31 = sphi 0, %s29
      %s32 = sphi 0, %s30
      %s33 = sphi 0, %s31
      %s34 = sphi 0, %s32
      %s46 = sphi 0, %s48
      %s49 = sphi 0, %s46
      %s50 = sphi 0, %s49
      %s66 = sphi 0, %s50
      %s72 = sphi 0, %s74
      %s75 = sphi 0, %s72
      %s76 = sphi 0, %s75
      %s92 = sphi 0, %s76
      %s98 = sphi 0, %s100
      %s101 = sphi 0, %s98
      %s102 = sphi 0, %s101
      %s118 = sphi 0, %s102
      %s124 = sphi 0, %s126
      %s127 = sphi 0, %s124
      %s128 = sphi 0, %s127
      %s144 = sphi 0, %s128
      %s150 = sphi 0, %s152
      %s153 = sphi 0, %s150
      %s154 = sphi 0, %s153
      %s170 = sphi 0, %s154
      %s176 = sphi 0, %s178
      %s179 = sphi 0, %s176
      %s180 = sphi 0, %s179
      %s196 = sphi 0, %s180
      %s202 = sphi 0, %s204
      %s205 = sphi 0, %s202
      %s206 = sphi 0, %s205
      %s222 = sphi 0, %s206
      %s230 = sphi 0, %s232
      %s233 = sphi 0, %s230
      %s234 = sphi 0, %s233
      %s250 = sphi 0, %s234
      %s258 = sphi 0, %s260
      %s261 = sphi 0, %s258
      %s262 = sphi 0, %s261
      %s278 = sphi 0, %s262
      %s286 = sphi 0, %s288
      %s289 = sphi 0, %s286
      %s290 = sphi 0, %s289
      %s306 = sphi 0, %s290
    $region4: #{cosine_discriminator_forward.2} parent=1 // loop_header_branch
      %25 = sbr.rel (%p23) target = $region8
    $region5: #{cosine_discriminator_forward.2} parent=1 // loop_body
      %s27 = ssub.s32 %s22, 1
      %s28 = ssub.s32 %s22, 2
      %s35 = sadd.s32 1, %s30
      %p36 = scmp.ge.s32.totalorder %s35, 2
      %s37 = scalar_select %p36, 0, %s35
      %s38 = sadd.s32 1, %s29
      %s39 = scalar_select %p36, %s38, %s29
      %p40 = scmp.ge.s32.totalorder %s39, 2
      %s41 = scalar_select %p40, 0, %s39
      %s42 = ssub.s32 %s29, %s41
      %s43 = ssub.s32 %s30, %s37
      %s44 = sor.u32 %s42, %s43
      %p45 = scmp.eq.s32.totalorder %s44, 0
      %s47 = sadd.s32 %s46, 1
      %s48 = scalar_select %p45, %s46, %s47
      %p51 = pneg %p45
      %p52 = scmp.eq.s32.totalorder %s22, 3
      %p53 = por %p51, %p52
      %p54 = scmp.ne.s32.totalorder %s46, %s49
      %p55 = scmp.eq.s32.totalorder %s22, 0
      %p56 = por %p54, %p55
      %p57 = scmp.ne.s32.totalorder %s46, %s49
      %p58 = scmp.eq.s32.totalorder %s27, 3
      %p59 = por %p57, %p58
      %p60 = scmp.ne.s32.totalorder %s49, %s50
      %p61 = scmp.eq.s32.totalorder %s27, 0
      %p62 = por %p60, %p61
      %p63 = scmp.ne.s32.totalorder %s49, %s50
      %p64 = scmp.eq.s32.totalorder %s28, 3
      %p65 = por %p63, %p64
      %p67 = scmp.ne.s32.totalorder %s50, %s66
      %p68 = scmp.eq.s32.totalorder %s28, 0
      %p69 = por %p67, %p68
      %s70 = ssub.s32 %s29, %s41
      %p71 = scmp.eq.s32.totalorder %s70, 0
      %s73 = sadd.s32 %s72, 1
      %s74 = scalar_select %p71, %s72, %s73
      %p77 = pneg %p71
      %p78 = scmp.eq.s32.totalorder %s22, 3
      %p79 = por %p77, %p78
      %p80 = scmp.ne.s32.totalorder %s72, %s75
      %p81 = scmp.eq.s32.totalorder %s22, 0
      %p82 = por %p80, %p81
      %p83 = scmp.ne.s32.totalorder %s72, %s75
      %p84 = scmp.eq.s32.totalorder %s27, 3
      %p85 = por %p83, %p84
      %p86 = scmp.ne.s32.totalorder %s75, %s76
      %p87 = scmp.eq.s32.totalorder %s27, 0
      %p88 = por %p86, %p87
      %p89 = scmp.ne.s32.totalorder %s75, %s76
      %p90 = scmp.eq.s32.totalorder %s28, 3
      %p91 = por %p89, %p90
      %p93 = scmp.ne.s32.totalorder %s76, %s92
      %p94 = scmp.eq.s32.totalorder %s28, 0
      %p95 = por %p93, %p94
      %s96 = ssub.s32 %s29, %s41
      %p97 = scmp.eq.s32.totalorder %s96, 0
      %s99 = sadd.s32 %s98, 1
      %s100 = scalar_select %p97, %s98, %s99
      %p103 = pneg %p97
      %p104 = scmp.eq.s32.totalorder %s22, 3
      %p105 = por %p103, %p104
      %p106 = scmp.ne.s32.totalorder %s98, %s101
      %p107 = scmp.eq.s32.totalorder %s22, 0
      %p108 = por %p106, %p107
      %p109 = scmp.ne.s32.totalorder %s98, %s101
      %p110 = scmp.eq.s32.totalorder %s27, 3
      %p111 = por %p109, %p110
      %p112 = scmp.ne.s32.totalorder %s101, %s102
      %p113 = scmp.eq.s32.totalorder %s27, 0
      %p114 = por %p112, %p113
      %p115 = scmp.ne.s32.totalorder %s101, %s102
      %p116 = scmp.eq.s32.totalorder %s28, 3
      %p117 = por %p115, %p116
      %p119 = scmp.ne.s32.totalorder %s102, %s118
      %p120 = scmp.eq.s32.totalorder %s28, 0
      %p121 = por %p119, %p120
      %s122 = ssub.s32 %s29, %s41
      %p123 = scmp.eq.s32.totalorder %s122, 0
      %s125 = sadd.s32 %s124, 1
      %s126 = scalar_select %p123, %s124, %s125
      %p129 = pneg %p123
      %p130 = scmp.eq.s32.totalorder %s22, 3
      %p131 = por %p129, %p130
      %p132 = scmp.ne.s32.totalorder %s124, %s127
      %p133 = scmp.eq.s32.totalorder %s22, 0
      %p134 = por %p132, %p133
      %p135 = scmp.ne.s32.totalorder %s124, %s127
      %p136 = scmp.eq.s32.totalorder %s27, 3
      %p137 = por %p135, %p136
      %p138 = scmp.ne.s32.totalorder %s127, %s128
      %p139 = scmp.eq.s32.totalorder %s27, 0
      %p140 = por %p138, %p139
      %p141 = scmp.ne.s32.totalorder %s127, %s128
      %p142 = scmp.eq.s32.totalorder %s28, 3
      %p143 = por %p141, %p142
      %p145 = scmp.ne.s32.totalorder %s128, %s144
      %p146 = scmp.eq.s32.totalorder %s28, 0
      %p147 = por %p145, %p146
      %s148 = ssub.s32 %s29, %s41
      %p149 = scmp.eq.s32.totalorder %s148, 0
      %s151 = sadd.s32 %s150, 1
      %s152 = scalar_select %p149, %s150, %s151
      %p155 = pneg %p149
      %p156 = scmp.eq.s32.totalorder %s22, 3
      %p157 = por %p155, %p156
      %p158 = scmp.ne.s32.totalorder %s150, %s153
      %p159 = scmp.eq.s32.totalorder %s22, 0
      %p160 = por %p158, %p159
      %p161 = scmp.ne.s32.totalorder %s150, %s153
      %p162 = scmp.eq.s32.totalorder %s27, 3
      %p163 = por %p161, %p162
      %p164 = scmp.ne.s32.totalorder %s153, %s154
      %p165 = scmp.eq.s32.totalorder %s27, 0
      %p166 = por %p164, %p165
      %p167 = scmp.ne.s32.totalorder %s153, %s154
      %p168 = scmp.eq.s32.totalorder %s28, 3
      %p169 = por %p167, %p168
      %p171 = scmp.ne.s32.totalorder %s154, %s170
      %p172 = scmp.eq.s32.totalorder %s28, 0
      %p173 = por %p171, %p172
      %s174 = ssub.s32 %s29, %s41
      %p175 = scmp.eq.s32.totalorder %s174, 0
      %s177 = sadd.s32 %s176, 1
      %s178 = scalar_select %p175, %s176, %s177
      %p181 = pneg %p175
      %p182 = scmp.eq.s32.totalorder %s22, 3
      %p183 = por %p181, %p182
      %p184 = scmp.ne.s32.totalorder %s176, %s179
      %p185 = scmp.eq.s32.totalorder %s22, 0
      %p186 = por %p184, %p185
      %p187 = scmp.ne.s32.totalorder %s176, %s179
      %p188 = scmp.eq.s32.totalorder %s27, 3
      %p189 = por %p187, %p188
      %p190 = scmp.ne.s32.totalorder %s179, %s180
      %p191 = scmp.eq.s32.totalorder %s27, 0
      %p192 = por %p190, %p191
      %p193 = scmp.ne.s32.totalorder %s179, %s180
      %p194 = scmp.eq.s32.totalorder %s28, 3
      %p195 = por %p193, %p194
      %p197 = scmp.ne.s32.totalorder %s180, %s196
      %p198 = scmp.eq.s32.totalorder %s28, 0
      %p199 = por %p197, %p198
      %s200 = ssub.s32 %s29, %s41
      %p201 = scmp.eq.s32.totalorder %s200, 0
      %s203 = sadd.s32 %s202, 1
      %s204 = scalar_select %p201, %s202, %s203
      %p207 = pneg %p201
      %p208 = scmp.eq.s32.totalorder %s22, 3
      %p209 = por %p207, %p208
      %p210 = scmp.ne.s32.totalorder %s202, %s205
      %p211 = scmp.eq.s32.totalorder %s22, 0
      %p212 = por %p210, %p211
      %p213 = scmp.ne.s32.totalorder %s202, %s205
      %p214 = scmp.eq.s32.totalorder %s27, 3
      %p215 = por %p213, %p214
      %p216 = scmp.ne.s32.totalorder %s205, %s206
      %p217 = scmp.eq.s32.totalorder %s27, 0
      %p218 = por %p216, %p217
      %p219 = scmp.ne.s32.totalorder %s205, %s206
      %p220 = scmp.eq.s32.totalorder %s28, 3
      %p221 = por %p219, %p220
      %p223 = scmp.ne.s32.totalorder %s206, %s222
      %p224 = scmp.eq.s32.totalorder %s28, 0
      %p225 = por %p223, %p224
      %s226 = ssub.s32 %s29, %s41
      %s227 = ssub.s32 %s30, %s37
      %s228 = sor.u32 %s226, %s227
      %p229 = scmp.eq.s32.totalorder %s228, 0
      %s231 = sadd.s32 %s230, 1
      %s232 = scalar_select %p229, %s230, %s231
      %p235 = pneg %p229
      %p236 = scmp.eq.s32.totalorder %s22, 3
      %p237 = por %p235, %p236
      %p238 = scmp.ne.s32.totalorder %s230, %s233
      %p239 = scmp.eq.s32.totalorder %s22, 0
      %p240 = por %p238, %p239
      %p241 = scmp.ne.s32.totalorder %s230, %s233
      %p242 = scmp.eq.s32.totalorder %s27, 3
      %p243 = por %p241, %p242
      %p244 = scmp.ne.s32.totalorder %s233, %s234
      %p245 = scmp.eq.s32.totalorder %s27, 0
      %p246 = por %p244, %p245
      %p247 = scmp.ne.s32.totalorder %s233, %s234
      %p248 = scmp.eq.s32.totalorder %s28, 3
      %p249 = por %p247, %p248
      %p251 = scmp.ne.s32.totalorder %s234, %s250
      %p252 = scmp.eq.s32.totalorder %s28, 0
      %p253 = por %p251, %p252
      %s254 = ssub.s32 %s29, %s41
      %s255 = ssub.s32 %s30, %s37
      %s256 = sor.u32 %s254, %s255
      %p257 = scmp.eq.s32.totalorder %s256, 0
      %s259 = sadd.s32 %s258, 1
      %s260 = scalar_select %p257, %s258, %s259
      %p263 = pneg %p257
      %p264 = scmp.eq.s32.totalorder %s22, 3
      %p265 = por %p263, %p264
      %p266 = scmp.ne.s32.totalorder %s258, %s261
      %p267 = scmp.eq.s32.totalorder %s22, 0
      %p268 = por %p266, %p267
      %p269 = scmp.ne.s32.totalorder %s258, %s261
      %p270 = scmp.eq.s32.totalorder %s27, 3
      %p271 = por %p269, %p270
      %p272 = scmp.ne.s32.totalorder %s261, %s262
      %p273 = scmp.eq.s32.totalorder %s27, 0
      %p274 = por %p272, %p273
      %p275 = scmp.ne.s32.totalorder %s261, %s262
      %p276 = scmp.eq.s32.totalorder %s28, 3
      %p277 = por %p275, %p276
      %p279 = scmp.ne.s32.totalorder %s262, %s278
      %p280 = scmp.eq.s32.totalorder %s28, 0
      %p281 = por %p279, %p280
      %s282 = ssub.s32 %s29, %s41
      %s283 = ssub.s32 %s30, %s37
      %s284 = sor.u32 %s282, %s283
      %p285 = scmp.eq.s32.totalorder %s284, 0
      %s287 = sadd.s32 %s286, 1
      %s288 = scalar_select %p285, %s286, %s287
      %p291 = pneg %p285
      %p292 = scmp.eq.s32.totalorder %s22, 3
      %p293 = por %p291, %p292
      %p294 = scmp.ne.s32.totalorder %s286, %s289
      %p295 = scmp.eq.s32.totalorder %s22, 0
      %p296 = por %p294, %p295
      %p297 = scmp.ne.s32.totalorder %s286, %s289
      %p298 = scmp.eq.s32.totalorder %s27, 3
      %p299 = por %p297, %p298
      %p300 = scmp.ne.s32.totalorder %s289, %s290
      %p301 = scmp.eq.s32.totalorder %s27, 0
      %p302 = por %p300, %p301
      %p303 = scmp.ne.s32.totalorder %s289, %s290
      %p304 = scmp.eq.s32.totalorder %s28, 3
      %p305 = por %p303, %p304
      %p307 = scmp.ne.s32.totalorder %s290, %s306
      %p308 = scmp.eq.s32.totalorder %s28, 0
      %p309 = por %p307, %p308
      %p310 = scmp.le.s32.totalorder 1, %s22
      %p311 = scmp.lt.s32.totalorder %s22, 5
      %p312 = pnand %p310, %p311
      %p313 = pneg %p312
      // Predicated region
      $region9: #{cosine_discriminator_forward.2} parent=5 // pred_check
        _
      $region10: #{cosine_discriminator_forward.2} parent=5 // pred_check_branch
        %315 = sbr.rel (%p312) target = $region12
      $region11: #{cosine_discriminator_forward.2} parent=5 // pred_region
        %s316 = ssub.s32 %s22, 1
      $region12: #{cosine_discriminator_forward.2} parent=5 // pred_fallthru
        _
      %p317 = scmp.lt.s32.totalorder %s22, 4
      // Predicated region
      $region13: #{cosine_discriminator_forward.2} parent=5 // pred_check
        %p318 = pneg %p317
      $region14: #{cosine_discriminator_forward.2} parent=5 // pred_check_branch
        %320 = sbr.rel (%p318) target = $region16
      $region15: #{cosine_discriminator_forward.2} parent=5 // pred_region
        // Predicated region
        $region17: #{cosine_discriminator_forward.2} parent=15 // pred_check
          %p321 = pneg %p56
        $region18: #{cosine_discriminator_forward.2} parent=15 // pred_check_branch
          %323 = sbr.rel (%p321) target = $region20
        $region19: #{cosine_discriminator_forward.2} parent=15 // pred_region
          %p324 = scmp.lt.s32.totalorder %s29, 1
          %s325 = scalar_select %p324, %s29, 1
          %p326 = scmp.lt.s32.totalorder %s30, 1
          %s327 = scalar_select %p326, %s30, 1
          %s328 = smul.addr %s327, 4
          %s329 = smul.addr %s325, 8
          %s330 = sadd.s32 %s328, %s329
          %s331 = smul.addr %s330, 8
          %s332 = scalar_lea.vmem %s0, %s331
        $region20: #{cosine_discriminator_forward.2} parent=15 // pred_fallthru
          _
        // Predicated region
        $region21: #{cosine_discriminator_forward.2} parent=15 // pred_check
          %p333 = pneg %p82
        $region22: #{cosine_discriminator_forward.2} parent=15 // pred_check_branch
          %335 = sbr.rel (%p333) target = $region24
        $region23: #{cosine_discriminator_forward.2} parent=15 // pred_region
          %p336 = scmp.lt.s32.totalorder %s29, 1
          %s337 = scalar_select %p336, %s29, 1
          %s338 = smul.addr %s337, 3
          %s339 = smul.addr %s338, 4
          %s340 = scalar_lea.vmem %s1, %s339
        $region24: #{cosine_discriminator_forward.2} parent=15 // pred_fallthru
          _
        // Predicated region
        $region25: #{cosine_discriminator_forward.2} parent=15 // pred_check
          %p341 = pneg %p108
        $region26: #{cosine_discriminator_forward.2} parent=15 // pred_check_branch
          %343 = sbr.rel (%p341) target = $region28
        $region27: #{cosine_discriminator_forward.2} parent=15 // pred_region
          %s344 = sand.u32 %s98, 1
          %s345 = scalar_lea.sflag [#allocation3], %s344
          %s346 = sand.u32 %s98, 1
          %s347 = smul.addr %s346, 384
          %s348 = scalar_lea.vmem [#allocation2], %s347
          %s350 = ssub.s32 6144, 6144
          %351 = vsyncadd %s345, %s350
          %s352 = smul.addr %s29, 48
          %s353 = smul.addr %s352, 128
          %s354 = scalar_lea.hbm %s2, %s353
          %s355 = sshll.u32 %s348, 4
          %s356 = int_to_ptr.vmem [resolvable:$true] %s355
          %361 = dma.hbm_to_vmem [thread:$0]  %s354, 6144, %s356, %s345, 128, 128, 8
        $region28: #{cosine_discriminator_forward.2} parent=15 // pred_fallthru
          _
        // Predicated region
        $region29: #{cosine_discriminator_forward.2} parent=15 // pred_check
          %p362 = pneg %p134
        $region30: #{cosine_discriminator_forward.2} parent=15 // pred_check_branch
          %364 = sbr.rel (%p362) target = $region32
        $region31: #{cosine_discriminator_forward.2} parent=15 // pred_region
          %s365 = sand.u32 %s124, 1
          %s366 = scalar_lea.sflag [#allocation5], %s365
          %s367 = sand.u32 %s124, 1
          %s368 = smul.addr %s367, 384
          %s369 = scalar_lea.vmem [#allocation4], %s368
          %s371 = ssub.s32 6144, 6144
          %372 = vsyncadd %s366, %s371
          %s373 = smul.addr %s29, 48
          %s374 = smul.addr %s373, 128
          %s375 = scalar_lea.hbm %s3, %s374
          %s376 = sshll.u32 %s369, 4
          %s377 = int_to_ptr.vmem [resolvable:$true] %s376
          %382 = dma.hbm_to_vmem [thread:$0]  %s375, 6144, %s377, %s366, 128, 128, 8
        $region32: #{cosine_discriminator_forward.2} parent=15 // pred_fallthru
          _
        // Predicated region
        $region33: #{cosine_discriminator_forward.2} parent=15 // pred_check
          %p383 = pneg %p160
        $region34: #{cosine_discriminator_forward.2} parent=15 // pred_check_branch
          %385 = sbr.rel (%p383) target = $region36
        $region35: #{cosine_discriminator_forward.2} parent=15 // pred_region
          %p386 = scmp.lt.s32.totalorder %s29, 1
          %s387 = scalar_select %p386, %s29, 1
          %s388 = smul.addr %s387, 4
          %s389 = scalar_lea.vmem %s4, %s388
        $region36: #{cosine_discriminator_forward.2} parent=15 // pred_fallthru
          _
        // Predicated region
        $region37: #{cosine_discriminator_forward.2} parent=15 // pred_check
          %p390 = pneg %p186
        $region38: #{cosine_discriminator_forward.2} parent=15 // pred_check_branch
          %392 = sbr.rel (%p390) target = $region40
        $region39: #{cosine_discriminator_forward.2} parent=15 // pred_region
          %p393 = scmp.lt.s32.totalorder %s29, 1
          %s394 = scalar_select %p393, %s29, 1
          %s395 = smul.addr %s394, 4
          %s396 = scalar_lea.vmem %s5, %s395
        $region40: #{cosine_discriminator_forward.2} parent=15 // pred_fallthru
          _
        // Predicated region
        $region41: #{cosine_discriminator_forward.2} parent=15 // pred_check
          %p397 = pneg %p212
        $region42: #{cosine_discriminator_forward.2} parent=15 // pred_check_branch
          %399 = sbr.rel (%p397) target = $region44
        $region43: #{cosine_discriminator_forward.2} parent=15 // pred_region
          %p400 = scmp.lt.s32.totalorder %s29, 1
          %s401 = scalar_select %p400, %s29, 1
          %s402 = smul.addr %s401, 4
          %s403 = scalar_lea.vmem %s6, %s402
        $region44: #{cosine_discriminator_forward.2} parent=15 // pred_fallthru
          _
      $region16: #{cosine_discriminator_forward.2} parent=5 // pred_fallthru
        _
      %p404 = scmp.le.s32.totalorder 1, %s22
      %p405 = scmp.lt.s32.totalorder %s22, 5
      %p406 = pnand %p404, %p405
      %p407 = pneg %p406
      // Predicated region
      $region45: #{cosine_discriminator_forward.2} parent=5 // pred_check
        _
      $region46: #{cosine_discriminator_forward.2} parent=5 // pred_check_branch
        %409 = sbr.rel (%p406) target = $region48
      $region47: #{cosine_discriminator_forward.2} parent=5 // pred_region
        %s410 = ssub.s32 %s22, 1
        %s411 = sand.u32 %s101, 1
        %s412 = scalar_lea.sflag [#allocation3], %s411
        %s413 = sand.u32 %s101, 1
        %s414 = smul.addr %s413, 384
        %s415 = scalar_lea.vmem [#allocation2], %s414
        // Predicated region
        $region49: #{cosine_discriminator_forward.2} parent=47 // pred_check
          %p416 = pneg %p114
        $region50: #{cosine_discriminator_forward.2} parent=47 // pred_check_branch
          %418 = sbr.rel (%p416) target = $region52
        $region51: #{cosine_discriminator_forward.2} parent=47 // pred_region
          %419 = dma.done %s412, 6144
        $region52: #{cosine_discriminator_forward.2} parent=47 // pred_fallthru
          _
        %s420 = sand.u32 %s127, 1
        %s421 = scalar_lea.sflag [#allocation5], %s420
        %s422 = sand.u32 %s127, 1
        %s423 = smul.addr %s422, 384
        %s424 = scalar_lea.vmem [#allocation4], %s423
        // Predicated region
        $region53: #{cosine_discriminator_forward.2} parent=47 // pred_check
          %p425 = pneg %p140
        $region54: #{cosine_discriminator_forward.2} parent=47 // pred_check_branch
          %427 = sbr.rel (%p425) target = $region56
        $region55: #{cosine_discriminator_forward.2} parent=47 // pred_region
          %428 = dma.done %s421, 6144
        $region56: #{cosine_discriminator_forward.2} parent=47 // pred_fallthru
          _
        %p429 = scmp.lt.s32.totalorder %s31, 1
        %s430 = scalar_select %p429, %s31, 1
        %p431 = scmp.lt.s32.totalorder %s32, 1
        %s432 = scalar_select %p431, %s32, 1
        %s433 = smul.addr %s432, 4
        %s434 = smul.addr %s430, 8
        %s435 = sadd.s32 %s433, %s434
        %s436 = smul.addr %s435, 8
        %s437 = scalar_lea.vmem %s0, %s436
        %p438 = pneg %p62
        %p439 = pneg %p59
        %p440 = scmp.lt.s32.totalorder %s31, 1
        %s441 = scalar_select %p440, %s31, 1
        %s442 = smul.addr %s441, 3
        %s443 = smul.addr %s442, 4
        %s444 = scalar_lea.vmem %s1, %s443
        %p445 = pneg %p88
        %p446 = pneg %p85
        %s447 = sand.u32 %s101, 1
        %s448 = scalar_lea.sflag [#allocation3], %s447
        %s449 = sand.u32 %s101, 1
        %s450 = smul.addr %s449, 384
        %s451 = scalar_lea.vmem [#allocation2], %s450
        %p452 = pneg %p114
        %p453 = pneg %p111
        %s454 = sand.u32 %s127, 1
        %s455 = scalar_lea.sflag [#allocation5], %s454
        %s456 = sand.u32 %s127, 1
        %s457 = smul.addr %s456, 384
        %s458 = scalar_lea.vmem [#allocation4], %s457
        %p459 = pneg %p140
        %p460 = pneg %p137
        %p461 = scmp.lt.s32.totalorder %s31, 1
        %s462 = scalar_select %p461, %s31, 1
        %s463 = smul.addr %s462, 4
        %s464 = scalar_lea.vmem %s4, %s463
        %p465 = pneg %p166
        %p466 = pneg %p163
        %p467 = scmp.lt.s32.totalorder %s31, 1
        %s468 = scalar_select %p467, %s31, 1
        %s469 = smul.addr %s468, 4
        %s470 = scalar_lea.vmem %s5, %s469
        %p471 = pneg %p192
        %p472 = pneg %p189
        %p473 = scmp.lt.s32.totalorder %s31, 1
        %s474 = scalar_select %p473, %s31, 1
        %s475 = smul.addr %s474, 4
        %s476 = scalar_lea.vmem %s6, %s475
        %p477 = pneg %p218
        %p478 = pneg %p215
        %p479 = pneg %p246
        %p480 = pneg %p243
        %p481 = scmp.lt.s32.totalorder %s31, 1
        %s482 = scalar_select %p481, %s31, 1
        %p483 = scmp.lt.s32.totalorder %s32, 1
        %s484 = scalar_select %p483, %s32, 1
        %s485 = smul.addr %s484, 2
        %s486 = smul.addr %s482, 4
        %s487 = sadd.s32 %s485, %s486
        %s488 = smul.addr %s487, 8
        %s489 = scalar_lea.vmem %s7, %s488
        %p490 = pneg %p274
        %p491 = pneg %p271
        %p492 = scmp.lt.s32.totalorder %s31, 1
        %s493 = scalar_select %p492, %s31, 1
        %p494 = scmp.lt.s32.totalorder %s32, 1
        %s495 = scalar_select %p494, %s32, 1
        %s496 = smul.addr %s493, 2
        %s497 = sadd.s32 %s495, %s496
        %s498 = smul.addr %s497, 8
        %s499 = scalar_lea.vmem %s8, %s498
        %p500 = pneg %p302
        %p501 = pneg %p299
        %p502 = scmp.lt.s32.totalorder %s31, 1
        %s503 = scalar_select %p502, %s31, 1
        %p504 = scmp.lt.s32.totalorder %s32, 1
        %s505 = scalar_select %p504, %s32, 1
        %s506 = smul.addr %s503, 2
        %s507 = sadd.s32 %s505, %s506
        %s508 = smul.addr %s507, 4
        %s509 = scalar_lea.vmem %s9, %s508
        %p510 = scmp.lt.s32.totalorder %s31, 1
        %s511 = scalar_select %p510, %s31, 1
        %p512 = scmp.lt.s32.totalorder %s32, 1
        %s513 = scalar_select %p512, %s32, 1
        %s514 = smul.addr %s513, 4
        %s515 = smul.addr %s511, 8
        %s516 = sadd.s32 %s514, %s515
        %s517 = smul.addr %s516, 8
        %s518 = scalar_lea.vmem %s0, %s517
        %p519 = scmp.lt.s32.totalorder %s31, 1
        %s520 = scalar_select %p519, %s31, 1
        %s521 = smul.addr %s520, 3
        %s522 = smul.addr %s521, 4
        %s523 = scalar_lea.vmem %s1, %s522
        %p524 = scmp.lt.s32.totalorder %s31, 1
        %s525 = scalar_select %p524, %s31, 1
        %s526 = smul.addr %s525, 4
        %s527 = scalar_lea.vmem %s4, %s526
        %p528 = scmp.lt.s32.totalorder %s31, 1
        %s529 = scalar_select %p528, %s31, 1
        %s530 = smul.addr %s529, 4
        %s531 = scalar_lea.vmem %s5, %s530
        %p532 = scmp.lt.s32.totalorder %s31, 1
        %s533 = scalar_select %p532, %s31, 1
        %s534 = smul.addr %s533, 4
        %s535 = scalar_lea.vmem %s6, %s534
        %p536 = scmp.lt.s32.totalorder %s31, 1
        %s537 = scalar_select %p536, %s31, 1
        %p538 = scmp.lt.s32.totalorder %s32, 1
        %s539 = scalar_select %p538, %s32, 1
        %s540 = smul.addr %s539, 2
        %s541 = smul.addr %s537, 4
        %s542 = sadd.s32 %s540, %s541
        %s543 = smul.addr %s542, 8
        %s544 = scalar_lea.vmem %s7, %s543
        %p545 = scmp.lt.s32.totalorder %s31, 1
        %s546 = scalar_select %p545, %s31, 1
        %p547 = scmp.lt.s32.totalorder %s32, 1
        %s548 = scalar_select %p547, %s32, 1
        %s549 = smul.addr %s546, 2
        %s550 = sadd.s32 %s548, %s549
        %s551 = smul.addr %s550, 8
        %s552 = scalar_lea.vmem %s8, %s551
        %p553 = scmp.lt.s32.totalorder %s31, 1
        %s554 = scalar_select %p553, %s31, 1
        %p555 = scmp.lt.s32.totalorder %s32, 1
        %s556 = scalar_select %p555, %s32, 1
        %s557 = smul.addr %s554, 2
        %s558 = sadd.s32 %s556, %s557
        %s559 = smul.addr %s558, 4
        %s560 = scalar_lea.vmem %s9, %s559
        %v561 = vld [vmem:[%s518] sm:$0xff]
        %v562 = vld [vmem:[%s518 + $0x8] sm:$0xff]
        %v563 = vld [vmem:[%s518 + $0x10] sm:$0xff]
        %v564 = vld [vmem:[%s518 + $0x18] sm:$0xff]
        %v565 = vld [vmem:[%s523] sm:$0xf]
        %v566 = vld [vmem:[%s523 + $0x4] sm:$0xf]
        %v567 = vld [vmem:[%s523 + $0x8] sm:$0xf]
        %v568 = vld [vmem:[%s527] sm:$0x7]
        %v569 = vlaneseq
        %v570 = vshrl.u32 %v569, 7
        %v571 = vadd.s32 %v570, 8
        %v572 = vlaneseq
        %v573 = vand.u32 %v572, 127
        %v574 = vmul.u32 %v570, 2
        %v575 = vmul.u32 %v571, 2
        %v576 = vadd.s32 %v574, 4294967295
        %v577 = vadd.s32 %v575, 4294967295
        %vm578 = vcmp.eq.s32.totalorder %v573, %v576
        %vm579 = vcmp.eq.s32.totalorder %v573, %v577
        %v580 = vsel %vm578, 1, 0
        %v581 = vsel %vm579, 1, 0
        %v582 = vcvt.s32.f32 %v580
        %v583 = vcvt.s32.f32 %v581
        %vm584 = vcmask 261120
        %v586 = vsel %vm584, %v582, 0
        %v589 = vsel %vm584, %v583, 0
        %591 = vmatprep.subr.mxu0 0.0
        %592 = vmatpush1.msra.mxu0 0.0
        %593 = vmatprep.subr.mxu0 0.0
        %594 = vmatpush1.msra.mxu0 0.0
        %595 = vmatprep.subr.mxu0 0.0
        %596 = vmatpush1.msra.mxu0 0.0
        %597 = vmatprep.subr.mxu0 0.0
        %598 = vmatpush1.msra.mxu0 0.0
        %599 = vmatprep.subr.mxu0 0.0
        %600 = vmatpush1.msra.mxu0 0.0
        %601 = vmatprep.subr.mxu0 0.0
        %602 = vmatpush1.msra.mxu0 0.0
        %603 = vmatprep.subr.mxu0 0.0
        %604 = vmatpush1.msra.mxu0 0.0
        %605 = vmatprep.subr.mxu0 0.0
        %606 = vmatpush1.msra.mxu0 0.0
        %607 = vmatprep.subr.mxu0 0.0
        %608 = vmatpush1.msra.mxu0 0.0
        %609 = vmatprep.subr.mxu0 0.0
        %610 = vmatpush1.msra.mxu0 0.0
        %611 = vmatprep.subr.mxu0 0.0
        %612 = vmatpush1.msra.mxu0 0.0
        %613 = vmatprep.subr.mxu0 0.0
        %614 = vmatpush1.msra.mxu0 0.0
        %615 = vmatprep.subr.mxu0 0.0
        %616 = vmatpush1.msra.mxu0 %v564
        %617 = vmatprep.subr.mxu0 0.0
        %618 = vmatpush1.msra.mxu0 %v563
        %619 = vmatprep.subr.mxu0 0.0
        %620 = vmatpush1.msra.mxu0 %v562
        %621 = vmatprep.subr.mxu0 0.0
        %622 = vmatpush1.msra.mxu0 %v561
        %623 = vmatprep.subr.mxu0 0.0
        %624 = vmatpush2.msra.mxu0 0.0
        %625 = vmatprep.subr.mxu0 0.0
        %626 = vmatpush2.msra.mxu0 0.0
        %627 = vmatprep.subr.mxu0 0.0
        %628 = vmatpush2.msra.mxu0 0.0
        %629 = vmatprep.subr.mxu0 0.0
        %630 = vmatpush2.msra.mxu0 0.0
        %631 = vmatprep.subr.mxu0 0.0
        %632 = vmatpush2.msra.mxu0 0.0
        %633 = vmatprep.subr.mxu0 0.0
        %634 = vmatpush2.msra.mxu0 0.0
        %635 = vmatprep.subr.mxu0 0.0
        %636 = vmatpush2.msra.mxu0 0.0
        %637 = vmatprep.subr.mxu0 0.0
        %638 = vmatpush2.msra.mxu0 0.0
        %639 = vmatprep.subr.mxu0 0.0
        %640 = vmatpush2.msra.mxu0 0.0
        %641 = vmatprep.subr.mxu0 0.0
        %642 = vmatpush2.msra.mxu0 0.0
        %643 = vmatprep.subr.mxu0 0.0
        %644 = vmatpush2.msra.mxu0 0.0
        %645 = vmatprep.subr.mxu0 0.0
        %646 = vmatpush2.msra.mxu0 0.0
        %647 = vmatprep.subr.mxu0 0.0
        %648 = vmatpush2.msra.mxu0 0.0
        %649 = vmatprep.subr.mxu0 0.0
        %650 = vmatpush2.msra.mxu0 0.0
        %651 = vmatprep.subr.mxu0 0.0
        %652 = vmatpush2.msra.mxu0 0.0
        %653 = vmatprep.subr.mxu0 0.0
        %654 = vmatpush2.msra.mxu0 0.0
        %655 = vmatprep.mubr.f32.mxu0 0.0
        %656 = vmatmul.mubr.f32.gmra.mxu0 %v586
        %v657 = vpop.f32.mrf.mxu0
        %v658 = vadd.f32 0.0, %v657
        %v659 = vpop.f32.mrf.mxu0
        %660 = vmatprep.mubr.f32.mxu0 0.0
        %661 = vmatmul.mubr.f32.gmra.mxu0 %v589
        %v662 = vpop.f32.mrf.mxu0
        %v663 = vadd.f32 0.0, %v662
        %v664 = vpop.f32.mrf.mxu0
        %665 = vdwg.mxu0
        %vm666 = vcmp.eq.s32.totalorder %v573, %v574
        %vm667 = vcmp.eq.s32.totalorder %v573, %v575
        %v668 = vsel %vm666, 1, 0
        %v669 = vsel %vm667, 1, 0
        %v670 = vcvt.s32.f32 %v668
        %v671 = vcvt.s32.f32 %v669
        %v673 = vsel %vm584, %v670, 0
        %v676 = vsel %vm584, %v671, 0
        %678 = vmatprep.subr.mxu0 0.0
        %679 = vmatpush1.msra.mxu0 0.0
        %680 = vmatprep.subr.mxu0 0.0
        %681 = vmatpush1.msra.mxu0 0.0
        %682 = vmatprep.subr.mxu0 0.0
        %683 = vmatpush1.msra.mxu0 0.0
        %684 = vmatprep.subr.mxu0 0.0
        %685 = vmatpush1.msra.mxu0 0.0
        %686 = vmatprep.subr.mxu0 0.0
        %687 = vmatpush1.msra.mxu0 0.0
        %688 = vmatprep.subr.mxu0 0.0
        %689 = vmatpush1.msra.mxu0 0.0
        %690 = vmatprep.subr.mxu0 0.0
        %691 = vmatpush1.msra.mxu0 0.0
        %692 = vmatprep.subr.mxu0 0.0
        %693 = vmatpush1.msra.mxu0 0.0
        %694 = vmatprep.subr.mxu0 0.0
        %695 = vmatpush1.msra.mxu0 0.0
        %696 = vmatprep.subr.mxu0 0.0
        %697 = vmatpush1.msra.mxu0 0.0
        %698 = vmatprep.subr.mxu0 0.0
        %699 = vmatpush1.msra.mxu0 0.0
        %700 = vmatprep.subr.mxu0 0.0
        %701 = vmatpush1.msra.mxu0 0.0
        %702 = vmatprep.subr.mxu0 0.0
        %703 = vmatpush1.msra.mxu0 %v564
        %704 = vmatprep.subr.mxu0 0.0
        %705 = vmatpush1.msra.mxu0 %v563
        %706 = vmatprep.subr.mxu0 0.0
        %707 = vmatpush1.msra.mxu0 %v562
        %708 = vmatprep.subr.mxu0 0.0
        %709 = vmatpush1.msra.mxu0 %v561
        %710 = vmatprep.subr.mxu0 0.0
        %711 = vmatpush2.msra.mxu0 0.0
        %712 = vmatprep.subr.mxu0 0.0
        %713 = vmatpush2.msra.mxu0 0.0
        %714 = vmatprep.subr.mxu0 0.0
        %715 = vmatpush2.msra.mxu0 0.0
        %716 = vmatprep.subr.mxu0 0.0
        %717 = vmatpush2.msra.mxu0 0.0
        %718 = vmatprep.subr.mxu0 0.0
        %719 = vmatpush2.msra.mxu0 0.0
        %720 = vmatprep.subr.mxu0 0.0
        %721 = vmatpush2.msra.mxu0 0.0
        %722 = vmatprep.subr.mxu0 0.0
        %723 = vmatpush2.msra.mxu0 0.0
        %724 = vmatprep.subr.mxu0 0.0
        %725 = vmatpush2.msra.mxu0 0.0
        %726 = vmatprep.subr.mxu0 0.0
        %727 = vmatpush2.msra.mxu0 0.0
        %728 = vmatprep.subr.mxu0 0.0
        %729 = vmatpush2.msra.mxu0 0.0
        %730 = vmatprep.subr.mxu0 0.0
        %731 = vmatpush2.msra.mxu0 0.0
        %732 = vmatprep.subr.mxu0 0.0
        %733 = vmatpush2.msra.mxu0 0.0
        %734 = vmatprep.subr.mxu0 0.0
        %735 = vmatpush2.msra.mxu0 0.0
        %736 = vmatprep.subr.mxu0 0.0
        %737 = vmatpush2.msra.mxu0 0.0
        %738 = vmatprep.subr.mxu0 0.0
        %739 = vmatpush2.msra.mxu0 0.0
        %740 = vmatprep.subr.mxu0 0.0
        %741 = vmatpush2.msra.mxu0 0.0
        %742 = vmatprep.mubr.f32.mxu0 0.0
        %743 = vmatmul.mubr.f32.gmra.mxu0 %v673
        %v744 = vpop.f32.mrf.mxu0
        %v745 = vadd.f32 0.0, %v744
        %v746 = vpop.f32.mrf.mxu0
        %747 = vmatprep.mubr.f32.mxu0 0.0
        %748 = vmatmul.mubr.f32.gmra.mxu0 %v676
        %v749 = vpop.f32.mrf.mxu0
        %v750 = vadd.f32 0.0, %v749
        %v751 = vpop.f32.mrf.mxu0
        %752 = vdwg.mxu0
        %vm753 = vcmask 31744
        %v755 = vsel %vm753, %v745, 0
        %v758 = vsel %vm753, %v750, 0
        %vm760 = vcmask 1043456
        %v762 = vsel %vm760, %v566, 0
        %764 = vmatprep.subr.mxu0 0.0
        %765 = vmatpush1.msra.mxu0 0.0
        %766 = vmatprep.subr.mxu0 0.0
        %767 = vmatpush1.msra.mxu0 0.0
        %768 = vmatprep.subr.mxu0 0.0
        %769 = vmatpush1.msra.mxu0 0.0
        %770 = vmatprep.subr.mxu0 0.0
        %771 = vmatpush1.msra.mxu0 0.0
        %772 = vmatprep.subr.mxu0 0.0
        %773 = vmatpush1.msra.mxu0 0.0
        %774 = vmatprep.subr.mxu0 0.0
        %775 = vmatpush1.msra.mxu0 0.0
        %776 = vmatprep.subr.mxu0 0.0
        %777 = vmatpush1.msra.mxu0 0.0
        %778 = vmatprep.subr.mxu0 0.0
        %779 = vmatpush1.msra.mxu0 0.0
        %780 = vmatprep.subr.mxu0 0.0
        %781 = vmatpush1.msra.mxu0 0.0
        %782 = vmatprep.subr.mxu0 0.0
        %783 = vmatpush1.msra.mxu0 0.0
        %784 = vmatprep.subr.mxu0 0.0
        %785 = vmatpush1.msra.mxu0 0.0
        %786 = vmatprep.subr.mxu0 0.0
        %787 = vmatpush1.msra.mxu0 0.0
        %788 = vmatprep.subr.mxu0 0.0
        %789 = vmatpush1.msra.mxu0 0.0
        %790 = vmatprep.subr.mxu0 0.0
        %791 = vmatpush1.msra.mxu0 0.0
        %792 = vmatprep.subr.mxu0 0.0
        %793 = vmatpush1.msra.mxu0 0.0
        %794 = vmatprep.subr.mxu0 0.0
        %795 = vmatpush1.msra.mxu0 %v762
        %796 = vmatprep.subr.mxu0 0.0
        %797 = vmatpush2.msra.mxu0 0.0
        %798 = vmatprep.subr.mxu0 0.0
        %799 = vmatpush2.msra.mxu0 0.0
        %800 = vmatprep.subr.mxu0 0.0
        %801 = vmatpush2.msra.mxu0 0.0
        %802 = vmatprep.subr.mxu0 0.0
        %803 = vmatpush2.msra.mxu0 0.0
        %804 = vmatprep.subr.mxu0 0.0
        %805 = vmatpush2.msra.mxu0 0.0
        %806 = vmatprep.subr.mxu0 0.0
        %807 = vmatpush2.msra.mxu0 0.0
        %808 = vmatprep.subr.mxu0 0.0
        %809 = vmatpush2.msra.mxu0 0.0
        %810 = vmatprep.subr.mxu0 0.0
        %811 = vmatpush2.msra.mxu0 0.0
        %812 = vmatprep.subr.mxu0 0.0
        %813 = vmatpush2.msra.mxu0 0.0
        %814 = vmatprep.subr.mxu0 0.0
        %815 = vmatpush2.msra.mxu0 0.0
        %816 = vmatprep.subr.mxu0 0.0
        %817 = vmatpush2.msra.mxu0 0.0
        %818 = vmatprep.subr.mxu0 0.0
        %819 = vmatpush2.msra.mxu0 0.0
        %820 = vmatprep.subr.mxu0 0.0
        %821 = vmatpush2.msra.mxu0 0.0
        %822 = vmatprep.subr.mxu0 0.0
        %823 = vmatpush2.msra.mxu0 0.0
        %824 = vmatprep.subr.mxu0 0.0
        %825 = vmatpush2.msra.mxu0 0.0
        %826 = vmatprep.subr.mxu0 0.0
        %827 = vmatpush2.msra.mxu0 0.0
        %828 = vmatprep.mubr.f32.mxu0 0.0
        %829 = vmatmul.mubr.f32.gmra.mxu0 %v755
        %v830 = vpop.f32.mrf.mxu0
        %v831 = vadd.f32 0.0, %v830
        %v832 = vpop.f32.mrf.mxu0
        %833 = vmatprep.mubr.f32.mxu0 0.0
        %834 = vmatmul.mubr.f32.gmra.mxu0 %v758
        %v835 = vpop.f32.mrf.mxu0
        %v836 = vadd.f32 0.0, %v835
        %v837 = vpop.f32.mrf.mxu0
        %838 = vdwg.mxu0
        %v840 = vsel %vm753, %v658, 0
        %v843 = vsel %vm753, %v663, 0
        %v846 = vsel %vm760, %v565, 0
        %848 = vmatprep.subr.mxu0 0.0
        %849 = vmatpush1.msra.mxu0 0.0
        %850 = vmatprep.subr.mxu0 0.0
        %851 = vmatpush1.msra.mxu0 0.0
        %852 = vmatprep.subr.mxu0 0.0
        %853 = vmatpush1.msra.mxu0 0.0
        %854 = vmatprep.subr.mxu0 0.0
        %855 = vmatpush1.msra.mxu0 0.0
        %856 = vmatprep.subr.mxu0 0.0
        %857 = vmatpush1.msra.mxu0 0.0
        %858 = vmatprep.subr.mxu0 0.0
        %859 = vmatpush1.msra.mxu0 0.0
        %860 = vmatprep.subr.mxu0 0.0
        %861 = vmatpush1.msra.mxu0 0.0
        %862 = vmatprep.subr.mxu0 0.0
        %863 = vmatpush1.msra.mxu0 0.0
        %864 = vmatprep.subr.mxu0 0.0
        %865 = vmatpush1.msra.mxu0 0.0
        %866 = vmatprep.subr.mxu0 0.0
        %867 = vmatpush1.msra.mxu0 0.0
        %868 = vmatprep.subr.mxu0 0.0
        %869 = vmatpush1.msra.mxu0 0.0
        %870 = vmatprep.subr.mxu0 0.0
        %871 = vmatpush1.msra.mxu0 0.0
        %872 = vmatprep.subr.mxu0 0.0
        %873 = vmatpush1.msra.mxu0 0.0
        %874 = vmatprep.subr.mxu0 0.0
        %875 = vmatpush1.msra.mxu0 0.0
        %876 = vmatprep.subr.mxu0 0.0
        %877 = vmatpush1.msra.mxu0 0.0
        %878 = vmatprep.subr.mxu0 0.0
        %879 = vmatpush1.msra.mxu0 %v846
        %880 = vmatprep.subr.mxu0 0.0
        %881 = vmatpush2.msra.mxu0 0.0
        %882 = vmatprep.subr.mxu0 0.0
        %883 = vmatpush2.msra.mxu0 0.0
        %884 = vmatprep.subr.mxu0 0.0
        %885 = vmatpush2.msra.mxu0 0.0
        %886 = vmatprep.subr.mxu0 0.0
        %887 = vmatpush2.msra.mxu0 0.0
        %888 = vmatprep.subr.mxu0 0.0
        %889 = vmatpush2.msra.mxu0 0.0
        %890 = vmatprep.subr.mxu0 0.0
        %891 = vmatpush2.msra.mxu0 0.0
        %892 = vmatprep.subr.mxu0 0.0
        %893 = vmatpush2.msra.mxu0 0.0
        %894 = vmatprep.subr.mxu0 0.0
        %895 = vmatpush2.msra.mxu0 0.0
        %896 = vmatprep.subr.mxu0 0.0
        %897 = vmatpush2.msra.mxu0 0.0
        %898 = vmatprep.subr.mxu0 0.0
        %899 = vmatpush2.msra.mxu0 0.0
        %900 = vmatprep.subr.mxu0 0.0
        %901 = vmatpush2.msra.mxu0 0.0
        %902 = vmatprep.subr.mxu0 0.0
        %903 = vmatpush2.msra.mxu0 0.0
        %904 = vmatprep.subr.mxu0 0.0
        %905 = vmatpush2.msra.mxu0 0.0
        %906 = vmatprep.subr.mxu0 0.0
        %907 = vmatpush2.msra.mxu0 0.0
        %908 = vmatprep.subr.mxu0 0.0
        %909 = vmatpush2.msra.mxu0 0.0
        %910 = vmatprep.subr.mxu0 0.0
        %911 = vmatpush2.msra.mxu0 0.0
        %912 = vmatprep.mubr.f32.mxu0 0.0
        %913 = vmatmul.mubr.f32.gmra.mxu0 %v840
        %v914 = vpop.f32.mrf.mxu0
        %v915 = vadd.f32 %v831, %v914
        %v916 = vpop.f32.mrf.mxu0
        %917 = vmatprep.mubr.f32.mxu0 0.0
        %918 = vmatmul.mubr.f32.gmra.mxu0 %v843
        %v919 = vpop.f32.mrf.mxu0
        %v920 = vadd.f32 %v836, %v919
        %v921 = vpop.f32.mrf.mxu0
        %922 = vdwg.mxu0
        %v923 = vadd.s32 %v574, 1
        %v924 = vadd.s32 %v575, 1
        %vm925 = vcmp.eq.s32.totalorder %v573, %v923
        %vm926 = vcmp.eq.s32.totalorder %v573, %v924
        %v927 = vsel %vm925, 1, 0
        %v928 = vsel %vm926, 1, 0
        %v929 = vcvt.s32.f32 %v927
        %v930 = vcvt.s32.f32 %v928
        %v932 = vsel %vm584, %v929, 0
        %v935 = vsel %vm584, %v930, 0
        %937 = vmatprep.subr.mxu0 0.0
        %938 = vmatpush1.msra.mxu0 0.0
        %939 = vmatprep.subr.mxu0 0.0
        %940 = vmatpush1.msra.mxu0 0.0
        %941 = vmatprep.subr.mxu0 0.0
        %942 = vmatpush1.msra.mxu0 0.0
        %943 = vmatprep.subr.mxu0 0.0
        %944 = vmatpush1.msra.mxu0 0.0
        %945 = vmatprep.subr.mxu0 0.0
        %946 = vmatpush1.msra.mxu0 0.0
        %947 = vmatprep.subr.mxu0 0.0
        %948 = vmatpush1.msra.mxu0 0.0
        %949 = vmatprep.subr.mxu0 0.0
        %950 = vmatpush1.msra.mxu0 0.0
        %951 = vmatprep.subr.mxu0 0.0
        %952 = vmatpush1.msra.mxu0 0.0
        %953 = vmatprep.subr.mxu0 0.0
        %954 = vmatpush1.msra.mxu0 0.0
        %955 = vmatprep.subr.mxu0 0.0
        %956 = vmatpush1.msra.mxu0 0.0
        %957 = vmatprep.subr.mxu0 0.0
        %958 = vmatpush1.msra.mxu0 0.0
        %959 = vmatprep.subr.mxu0 0.0
        %960 = vmatpush1.msra.mxu0 0.0
        %961 = vmatprep.subr.mxu0 0.0
        %962 = vmatpush1.msra.mxu0 %v564
        %963 = vmatprep.subr.mxu0 0.0
        %964 = vmatpush1.msra.mxu0 %v563
        %965 = vmatprep.subr.mxu0 0.0
        %966 = vmatpush1.msra.mxu0 %v562
        %967 = vmatprep.subr.mxu0 0.0
        %968 = vmatpush1.msra.mxu0 %v561
        %969 = vmatprep.subr.mxu0 0.0
        %970 = vmatpush2.msra.mxu0 0.0
        %971 = vmatprep.subr.mxu0 0.0
        %972 = vmatpush2.msra.mxu0 0.0
        %973 = vmatprep.subr.mxu0 0.0
        %974 = vmatpush2.msra.mxu0 0.0
        %975 = vmatprep.subr.mxu0 0.0
        %976 = vmatpush2.msra.mxu0 0.0
        %977 = vmatprep.subr.mxu0 0.0
        %978 = vmatpush2.msra.mxu0 0.0
        %979 = vmatprep.subr.mxu0 0.0
        %980 = vmatpush2.msra.mxu0 0.0
        %981 = vmatprep.subr.mxu0 0.0
        %982 = vmatpush2.msra.mxu0 0.0
        %983 = vmatprep.subr.mxu0 0.0
        %984 = vmatpush2.msra.mxu0 0.0
        %985 = vmatprep.subr.mxu0 0.0
        %986 = vmatpush2.msra.mxu0 0.0
        %987 = vmatprep.subr.mxu0 0.0
        %988 = vmatpush2.msra.mxu0 0.0
        %989 = vmatprep.subr.mxu0 0.0
        %990 = vmatpush2.msra.mxu0 0.0
        %991 = vmatprep.subr.mxu0 0.0
        %992 = vmatpush2.msra.mxu0 0.0
        %993 = vmatprep.subr.mxu0 0.0
        %994 = vmatpush2.msra.mxu0 0.0
        %995 = vmatprep.subr.mxu0 0.0
        %996 = vmatpush2.msra.mxu0 0.0
        %997 = vmatprep.subr.mxu0 0.0
        %998 = vmatpush2.msra.mxu0 0.0
        %999 = vmatprep.subr.mxu0 0.0
        %1000 = vmatpush2.msra.mxu0 0.0
        %1001 = vmatprep.mubr.f32.mxu0 0.0
        %1002 = vmatmul.mubr.f32.gmra.mxu0 %v932
        %v1003 = vpop.f32.mrf.mxu0
        %v1004 = vadd.f32 0.0, %v1003
        %v1005 = vpop.f32.mrf.mxu0
        %1006 = vmatprep.mubr.f32.mxu0 0.0
        %1007 = vmatmul.mubr.f32.gmra.mxu0 %v935
        %v1008 = vpop.f32.mrf.mxu0
        %v1009 = vadd.f32 0.0, %v1008
        %v1010 = vpop.f32.mrf.mxu0
        %1011 = vdwg.mxu0
        %v1013 = vsel %vm753, %v1004, 0
        %v1016 = vsel %vm753, %v1009, 0
        %v1019 = vsel %vm760, %v567, 0
        %1021 = vmatprep.subr.mxu0 0.0
        %1022 = vmatpush1.msra.mxu0 0.0
        %1023 = vmatprep.subr.mxu0 0.0
        %1024 = vmatpush1.msra.mxu0 0.0
        %1025 = vmatprep.subr.mxu0 0.0
        %1026 = vmatpush1.msra.mxu0 0.0
        %1027 = vmatprep.subr.mxu0 0.0
        %1028 = vmatpush1.msra.mxu0 0.0
        %1029 = vmatprep.subr.mxu0 0.0
        %1030 = vmatpush1.msra.mxu0 0.0
        %1031 = vmatprep.subr.mxu0 0.0
        %1032 = vmatpush1.msra.mxu0 0.0
        %1033 = vmatprep.subr.mxu0 0.0
        %1034 = vmatpush1.msra.mxu0 0.0
        %1035 = vmatprep.subr.mxu0 0.0
        %1036 = vmatpush1.msra.mxu0 0.0
        %1037 = vmatprep.subr.mxu0 0.0
        %1038 = vmatpush1.msra.mxu0 0.0
        %1039 = vmatprep.subr.mxu0 0.0
        %1040 = vmatpush1.msra.mxu0 0.0
        %1041 = vmatprep.subr.mxu0 0.0
        %1042 = vmatpush1.msra.mxu0 0.0
        %1043 = vmatprep.subr.mxu0 0.0
        %1044 = vmatpush1.msra.mxu0 0.0
        %1045 = vmatprep.subr.mxu0 0.0
        %1046 = vmatpush1.msra.mxu0 0.0
        %1047 = vmatprep.subr.mxu0 0.0
        %1048 = vmatpush1.msra.mxu0 0.0
        %1049 = vmatprep.subr.mxu0 0.0
        %1050 = vmatpush1.msra.mxu0 0.0
        %1051 = vmatprep.subr.mxu0 0.0
        %1052 = vmatpush1.msra.mxu0 %v1019
        %1053 = vmatprep.subr.mxu0 0.0
        %1054 = vmatpush2.msra.mxu0 0.0
        %1055 = vmatprep.subr.mxu0 0.0
        %1056 = vmatpush2.msra.mxu0 0.0
        %1057 = vmatprep.subr.mxu0 0.0
        %1058 = vmatpush2.msra.mxu0 0.0
        %1059 = vmatprep.subr.mxu0 0.0
        %1060 = vmatpush2.msra.mxu0 0.0
        %1061 = vmatprep.subr.mxu0 0.0
        %1062 = vmatpush2.msra.mxu0 0.0
        %1063 = vmatprep.subr.mxu0 0.0
        %1064 = vmatpush2.msra.mxu0 0.0
        %1065 = vmatprep.subr.mxu0 0.0
        %1066 = vmatpush2.msra.mxu0 0.0
        %1067 = vmatprep.subr.mxu0 0.0
        %1068 = vmatpush2.msra.mxu0 0.0
        %1069 = vmatprep.subr.mxu0 0.0
        %1070 = vmatpush2.msra.mxu0 0.0
        %1071 = vmatprep.subr.mxu0 0.0
        %1072 = vmatpush2.msra.mxu0 0.0
        %1073 = vmatprep.subr.mxu0 0.0
        %1074 = vmatpush2.msra.mxu0 0.0
        %1075 = vmatprep.subr.mxu0 0.0
        %1076 = vmatpush2.msra.mxu0 0.0
        %1077 = vmatprep.subr.mxu0 0.0
        %1078 = vmatpush2.msra.mxu0 0.0
        %1079 = vmatprep.subr.mxu0 0.0
        %1080 = vmatpush2.msra.mxu0 0.0
        %1081 = vmatprep.subr.mxu0 0.0
        %1082 = vmatpush2.msra.mxu0 0.0
        %1083 = vmatprep.subr.mxu0 0.0
        %1084 = vmatpush2.msra.mxu0 0.0
        %1085 = vmatprep.mubr.f32.mxu0 0.0
        %1086 = vmatmul.mubr.f32.gmra.mxu0 %v1013
        %v1087 = vpop.f32.mrf.mxu0
        %v1088 = vadd.f32 0.0, %v1087
        %v1089 = vpop.f32.mrf.mxu0
        %1090 = vmatprep.mubr.f32.mxu0 0.0
        %1091 = vmatmul.mubr.f32.gmra.mxu0 %v1016
        %v1092 = vpop.f32.mrf.mxu0
        %v1093 = vadd.f32 0.0, %v1092
        %v1094 = vpop.f32.mrf.mxu0
        %1095 = vdwg.mxu0
        %v1096 = vadd.f32 %v915, %v1088
        %v1097 = vadd.f32 %v920, %v1093
        %v1098 = vlaneseq
        %v1099 = vshrl.u32 %v1098, 7
        %v1100 = vsub.s32 0, %v1099
        %v1101 = vrot.slane %v568, %v1100
        %v1102 = vadd.f32 %v1096, %v1101
        %v1103 = vadd.f32 %v1097, %v1101
        %vm1104 = vcmp.gt.f32.partialorder %v1102, 0.0
        %vm1105 = vcmp.gt.f32.partialorder %v1103, 0.0
        %v1106 = vmul.f32 %v1102, 0.2
        %v1107 = vmul.f32 %v1103, 0.2
        %v1108 = vsel %vm1104, %v1102, %v1106
        %v1109 = vsel %vm1105, %v1103, %v1107
        %v1110 = vlaneseq
        %v1111 = vshrl.u32 %v1110, 7
        %v1112 = vsub.s32 1, %v1111
        %v1113 = vrot.slane %v568, %v1112
        %v1114 = vmul.f32 %v1108, %v1113
        %v1115 = vmul.f32 %v1109, %v1113
        %v1116 = vlaneseq
        %v1117 = vshrl.u32 %v1116, 7
        %v1118 = vsub.s32 2, %v1117
        %v1119 = vrot.slane %v568, %v1118
        %v1120 = vadd.f32 %v1114, %v1119
        %v1121 = vadd.f32 %v1115, %v1119
        %1122 = vst [vmem:[%s544] sm:$0xff] %v1120
        %1123 = vst [vmem:[%s544 + $0x8] sm:$0xff] %v1121
        %v1124 = vld [vmem:[%s415] sm:$0xff]
        %v1125 = vld [vmem:[%s415 + $0x8] sm:$0xff]
        %v1126 = vld [vmem:[%s415 + $0x10] sm:$0xff]
        %v1127 = vld [vmem:[%s415 + $0x18] sm:$0xff]
        %v1128 = vld [vmem:[%s415 + $0x20] sm:$0xff]
        %v1129 = vld [vmem:[%s415 + $0x28] sm:$0xff]
        %v1130 = vld [vmem:[%s415 + $0x30] sm:$0xff]
        %v1131 = vld [vmem:[%s415 + $0x38] sm:$0xff]
        %v1132 = vld [vmem:[%s415 + $0x40] sm:$0xff]
        %v1133 = vld [vmem:[%s415 + $0x48] sm:$0xff]
        %v1134 = vld [vmem:[%s415 + $0x50] sm:$0xff]
        %v1135 = vld [vmem:[%s415 + $0x58] sm:$0xff]
        %v1136 = vld [vmem:[%s415 + $0x60] sm:$0xff]
        %v1137 = vld [vmem:[%s415 + $0x68] sm:$0xff]
        %v1138 = vld [vmem:[%s415 + $0x70] sm:$0xff]
        %v1139 = vld [vmem:[%s415 + $0x78] sm:$0xff]
        %v1140 = vld [vmem:[%s415 + $0x80] sm:$0xff]
        %v1141 = vld [vmem:[%s415 + $0x88] sm:$0xff]
        %v1142 = vld [vmem:[%s415 + $0x90] sm:$0xff]
        %v1143 = vld [vmem:[%s415 + $0x98] sm:$0xff]
        %v1144 = vld [vmem:[%s415 + $0xa0] sm:$0xff]
        %v1145 = vld [vmem:[%s415 + $0xa8] sm:$0xff]
        %v1146 = vld [vmem:[%s415 + $0xb0] sm:$0xff]
        %v1147 = vld [vmem:[%s415 + $0xb8] sm:$0xff]
        %v1148 = vld [vmem:[%s415 + $0xc0] sm:$0xff]
        %v1149 = vld [vmem:[%s415 + $0xc8] sm:$0xff]
        %v1150 = vld [vmem:[%s415 + $0xd0] sm:$0xff]
        %v1151 = vld [vmem:[%s415 + $0xd8] sm:$0xff]
        %v1152 = vld [vmem:[%s415 + $0xe0] sm:$0xff]
        %v1153 = vld [vmem:[%s415 + $0xe8] sm:$0xff]
        %v1154 = vld [vmem:[%s415 + $0xf0] sm:$0xff]
        %v1155 = vld [vmem:[%s415 + $0xf8] sm:$0xff]
        %v1156 = vld [vmem:[%s415 + $0x100] sm:$0xff]
        %v1157 = vld [vmem:[%s415 + $0x108] sm:$0xff]
        %v1158 = vld [vmem:[%s415 + $0x110] sm:$0xff]
        %v1159 = vld [vmem:[%s415 + $0x118] sm:$0xff]
        %v1160 = vld [vmem:[%s415 + $0x120] sm:$0xff]
        %v1161 = vld [vmem:[%s415 + $0x128] sm:$0xff]
        %v1162 = vld [vmem:[%s415 + $0x130] sm:$0xff]
        %v1163 = vld [vmem:[%s415 + $0x138] sm:$0xff]
        %v1164 = vld [vmem:[%s415 + $0x140] sm:$0xff]
        %v1165 = vld [vmem:[%s415 + $0x148] sm:$0xff]
        %v1166 = vld [vmem:[%s415 + $0x150] sm:$0xff]
        %v1167 = vld [vmem:[%s415 + $0x158] sm:$0xff]
        %v1168 = vld [vmem:[%s415 + $0x160] sm:$0xff]
        %v1169 = vld [vmem:[%s415 + $0x168] sm:$0xff]
        %v1170 = vld [vmem:[%s415 + $0x170] sm:$0xff]
        %v1171 = vld [vmem:[%s415 + $0x178] sm:$0xff]
        %v1172 = vld [vmem:[%s531] sm:$0x7]
        %vm1173 = vcmask 130048
        %v1174 = vsel %vm1173, %v582, 0
        %1176 = vmatprep.subr.mxu0 0.0
        %1177 = vmatpush1.msra.mxu0 0.0
        %1178 = vmatprep.subr.mxu0 0.0
        %1179 = vmatpush1.msra.mxu0 0.0
        %1180 = vmatprep.subr.mxu0 0.0
        %1181 = vmatpush1.msra.mxu0 0.0
        %1182 = vmatprep.subr.mxu0 0.0
        %1183 = vmatpush1.msra.mxu0 0.0
        %1184 = vmatprep.subr.mxu0 0.0
        %1185 = vmatpush1.msra.mxu0 0.0
        %1186 = vmatprep.subr.mxu0 0.0
        %1187 = vmatpush1.msra.mxu0 0.0
        %1188 = vmatprep.subr.mxu0 0.0
        %1189 = vmatpush1.msra.mxu0 0.0
        %1190 = vmatprep.subr.mxu0 0.0
        %1191 = vmatpush1.msra.mxu0 0.0
        %1192 = vmatprep.subr.mxu0 0.0
        %1193 = vmatpush1.msra.mxu0 0.0
        %1194 = vmatprep.subr.mxu0 0.0
        %1195 = vmatpush1.msra.mxu0 0.0
        %1196 = vmatprep.subr.mxu0 0.0
        %1197 = vmatpush1.msra.mxu0 0.0
        %1198 = vmatprep.subr.mxu0 0.0
        %1199 = vmatpush1.msra.mxu0 0.0
        %1200 = vmatprep.subr.mxu0 0.0
        %1201 = vmatpush1.msra.mxu0 0.0
        %1202 = vmatprep.subr.mxu0 0.0
        %1203 = vmatpush1.msra.mxu0 0.0
        %1204 = vmatprep.subr.mxu0 0.0
        %1205 = vmatpush1.msra.mxu0 %v1121
        %1206 = vmatprep.subr.mxu0 0.0
        %1207 = vmatpush1.msra.mxu0 %v1120
        %1208 = vmatprep.subr.mxu0 0.0
        %1209 = vmatpush2.msra.mxu0 0.0
        %1210 = vmatprep.subr.mxu0 0.0
        %1211 = vmatpush2.msra.mxu0 0.0
        %1212 = vmatprep.subr.mxu0 0.0
        %1213 = vmatpush2.msra.mxu0 0.0
        %1214 = vmatprep.subr.mxu0 0.0
        %1215 = vmatpush2.msra.mxu0 0.0
        %1216 = vmatprep.subr.mxu0 0.0
        %1217 = vmatpush2.msra.mxu0 0.0
        %1218 = vmatprep.subr.mxu0 0.0
        %1219 = vmatpush2.msra.mxu0 0.0
        %1220 = vmatprep.subr.mxu0 0.0
        %1221 = vmatpush2.msra.mxu0 0.0
        %1222 = vmatprep.subr.mxu0 0.0
        %1223 = vmatpush2.msra.mxu0 0.0
        %1224 = vmatprep.subr.mxu0 0.0
        %1225 = vmatpush2.msra.mxu0 0.0
        %1226 = vmatprep.subr.mxu0 0.0
        %1227 = vmatpush2.msra.mxu0 0.0
        %1228 = vmatprep.subr.mxu0 0.0
        %1229 = vmatpush2.msra.mxu0 0.0
        %1230 = vmatprep.subr.mxu0 0.0
        %1231 = vmatpush2.msra.mxu0 0.0
        %1232 = vmatprep.subr.mxu0 0.0
        %1233 = vmatpush2.msra.mxu0 0.0
        %1234 = vmatprep.subr.mxu0 0.0
        %1235 = vmatpush2.msra.mxu0 0.0
        %1236 = vmatprep.subr.mxu0 0.0
        %1237 = vmatpush2.msra.mxu0 0.0
        %1238 = vmatprep.subr.mxu0 0.0
        %1239 = vmatpush2.msra.mxu0 0.0
        %1240 = vmatprep.mubr.f32.mxu0 0.0
        %1241 = vmatmul.mubr.f32.gmra.mxu0 %v1174
        %v1242 = vpop.f32.mrf.mxu0
        %v1243 = vadd.f32 0.0, %v1242
        %v1244 = vpop.f32.mrf.mxu0
        %1245 = vdwg.mxu0
        %v1246 = vsel %vm1173, %v670, 0
        %1248 = vmatprep.subr.mxu0 0.0
        %1249 = vmatpush1.msra.mxu0 0.0
        %1250 = vmatprep.subr.mxu0 0.0
        %1251 = vmatpush1.msra.mxu0 0.0
        %1252 = vmatprep.subr.mxu0 0.0
        %1253 = vmatpush1.msra.mxu0 0.0
        %1254 = vmatprep.subr.mxu0 0.0
        %1255 = vmatpush1.msra.mxu0 0.0
        %1256 = vmatprep.subr.mxu0 0.0
        %1257 = vmatpush1.msra.mxu0 0.0
        %1258 = vmatprep.subr.mxu0 0.0
        %1259 = vmatpush1.msra.mxu0 0.0
        %1260 = vmatprep.subr.mxu0 0.0
        %1261 = vmatpush1.msra.mxu0 0.0
        %1262 = vmatprep.subr.mxu0 0.0
        %1263 = vmatpush1.msra.mxu0 0.0
        %1264 = vmatprep.subr.mxu0 0.0
        %1265 = vmatpush1.msra.mxu0 0.0
        %1266 = vmatprep.subr.mxu0 0.0
        %1267 = vmatpush1.msra.mxu0 0.0
        %1268 = vmatprep.subr.mxu0 0.0
        %1269 = vmatpush1.msra.mxu0 0.0
        %1270 = vmatprep.subr.mxu0 0.0
        %1271 = vmatpush1.msra.mxu0 0.0
        %1272 = vmatprep.subr.mxu0 0.0
        %1273 = vmatpush1.msra.mxu0 0.0
        %1274 = vmatprep.subr.mxu0 0.0
        %1275 = vmatpush1.msra.mxu0 0.0
        %1276 = vmatprep.subr.mxu0 0.0
        %1277 = vmatpush1.msra.mxu0 %v1121
        %1278 = vmatprep.subr.mxu0 0.0
        %1279 = vmatpush1.msra.mxu0 %v1120
        %1280 = vmatprep.subr.mxu0 0.0
        %1281 = vmatpush2.msra.mxu0 0.0
        %1282 = vmatprep.subr.mxu0 0.0
        %1283 = vmatpush2.msra.mxu0 0.0
        %1284 = vmatprep.subr.mxu0 0.0
        %1285 = vmatpush2.msra.mxu0 0.0
        %1286 = vmatprep.subr.mxu0 0.0
        %1287 = vmatpush2.msra.mxu0 0.0
        %1288 = vmatprep.subr.mxu0 0.0
        %1289 = vmatpush2.msra.mxu0 0.0
        %1290 = vmatprep.subr.mxu0 0.0
        %1291 = vmatpush2.msra.mxu0 0.0
        %1292 = vmatprep.subr.mxu0 0.0
        %1293 = vmatpush2.msra.mxu0 0.0
        %1294 = vmatprep.subr.mxu0 0.0
        %1295 = vmatpush2.msra.mxu0 0.0
        %1296 = vmatprep.subr.mxu0 0.0
        %1297 = vmatpush2.msra.mxu0 0.0
        %1298 = vmatprep.subr.mxu0 0.0
        %1299 = vmatpush2.msra.mxu0 0.0
        %1300 = vmatprep.subr.mxu0 0.0
        %1301 = vmatpush2.msra.mxu0 0.0
        %1302 = vmatprep.subr.mxu0 0.0
        %1303 = vmatpush2.msra.mxu0 0.0
        %1304 = vmatprep.subr.mxu0 0.0
        %1305 = vmatpush2.msra.mxu0 0.0
        %1306 = vmatprep.subr.mxu0 0.0
        %1307 = vmatpush2.msra.mxu0 0.0
        %1308 = vmatprep.subr.mxu0 0.0
        %1309 = vmatpush2.msra.mxu0 0.0
        %1310 = vmatprep.subr.mxu0 0.0
        %1311 = vmatpush2.msra.mxu0 0.0
        %1312 = vmatprep.mubr.f32.mxu0 0.0
        %1313 = vmatmul.mubr.f32.gmra.mxu0 %v1246
        %v1314 = vpop.f32.mrf.mxu0
        %v1315 = vadd.f32 0.0, %v1314
        %v1316 = vpop.f32.mrf.mxu0
        %1317 = vdwg.mxu0
        %1318 = vmatprep.subr.mxu0 0.0
        %1319 = vmatpush1.msra.mxu0 %v1155
        %1320 = vmatprep.subr.mxu0 0.0
        %1321 = vmatpush1.msra.mxu0 %v1154
        %1322 = vmatprep.subr.mxu0 0.0
        %1323 = vmatpush1.msra.mxu0 %v1153
        %1324 = vmatprep.subr.mxu0 0.0
        %1325 = vmatpush1.msra.mxu0 %v1152
        %1326 = vmatprep.subr.mxu0 0.0
        %1327 = vmatpush1.msra.mxu0 %v1151
        %1328 = vmatprep.subr.mxu0 0.0
        %1329 = vmatpush1.msra.mxu0 %v1150
        %1330 = vmatprep.subr.mxu0 0.0
        %1331 = vmatpush1.msra.mxu0 %v1149
        %1332 = vmatprep.subr.mxu0 0.0
        %1333 = vmatpush1.msra.mxu0 %v1148
        %1334 = vmatprep.subr.mxu0 0.0
        %1335 = vmatpush1.msra.mxu0 %v1147
        %1336 = vmatprep.subr.mxu0 0.0
        %1337 = vmatpush1.msra.mxu0 %v1146
        %1338 = vmatprep.subr.mxu0 0.0
        %1339 = vmatpush1.msra.mxu0 %v1145
        %1340 = vmatprep.subr.mxu0 0.0
        %1341 = vmatpush1.msra.mxu0 %v1144
        %1342 = vmatprep.subr.mxu0 0.0
        %1343 = vmatpush1.msra.mxu0 %v1143
        %1344 = vmatprep.subr.mxu0 0.0
        %1345 = vmatpush1.msra.mxu0 %v1142
        %1346 = vmatprep.subr.mxu0 0.0
        %1347 = vmatpush1.msra.mxu0 %v1141
        %1348 = vmatprep.subr.mxu0 0.0
        %1349 = vmatpush1.msra.mxu0 %v1140
        %1350 = vmatprep.subr.mxu0 0.0
        %1351 = vmatpush2.msra.mxu0 0.0
        %1352 = vmatprep.subr.mxu0 0.0
        %1353 = vmatpush2.msra.mxu0 0.0
        %1354 = vmatprep.subr.mxu0 0.0
        %1355 = vmatpush2.msra.mxu0 0.0
        %1356 = vmatprep.subr.mxu0 0.0
        %1357 = vmatpush2.msra.mxu0 0.0
        %1358 = vmatprep.subr.mxu0 0.0
        %1359 = vmatpush2.msra.mxu0 0.0
        %1360 = vmatprep.subr.mxu0 0.0
        %1361 = vmatpush2.msra.mxu0 0.0
        %1362 = vmatprep.subr.mxu0 0.0
        %1363 = vmatpush2.msra.mxu0 0.0
        %1364 = vmatprep.subr.mxu0 0.0
        %1365 = vmatpush2.msra.mxu0 0.0
        %1366 = vmatprep.subr.mxu0 0.0
        %1367 = vmatpush2.msra.mxu0 0.0
        %1368 = vmatprep.subr.mxu0 0.0
        %1369 = vmatpush2.msra.mxu0 0.0
        %1370 = vmatprep.subr.mxu0 0.0
        %1371 = vmatpush2.msra.mxu0 0.0
        %1372 = vmatprep.subr.mxu0 0.0
        %1373 = vmatpush2.msra.mxu0 0.0
        %1374 = vmatprep.subr.mxu0 0.0
        %1375 = vmatpush2.msra.mxu0 0.0
        %1376 = vmatprep.subr.mxu0 0.0
        %1377 = vmatpush2.msra.mxu0 0.0
        %1378 = vmatprep.subr.mxu0 0.0
        %1379 = vmatpush2.msra.mxu0 0.0
        %1380 = vmatprep.subr.mxu0 0.0
        %1381 = vmatpush2.msra.mxu0 0.0
        %1382 = vmatprep.mubr.f32.mxu0 0.0
        %1383 = vmatmul.mubr.f32.gmra.mxu0 %v1315
        %v1384 = vpop.f32.mrf.mxu0
        %v1385 = vadd.f32 0.0, %v1384
        %v1386 = vpop.f32.mrf.mxu0
        %1387 = vdwg.mxu0
        %1388 = vmatprep.subr.mxu0 0.0
        %1389 = vmatpush1.msra.mxu0 %v1139
        %1390 = vmatprep.subr.mxu0 0.0
        %1391 = vmatpush1.msra.mxu0 %v1138
        %1392 = vmatprep.subr.mxu0 0.0
        %1393 = vmatpush1.msra.mxu0 %v1137
        %1394 = vmatprep.subr.mxu0 0.0
        %1395 = vmatpush1.msra.mxu0 %v1136
        %1396 = vmatprep.subr.mxu0 0.0
        %1397 = vmatpush1.msra.mxu0 %v1135
        %1398 = vmatprep.subr.mxu0 0.0
        %1399 = vmatpush1.msra.mxu0 %v1134
        %1400 = vmatprep.subr.mxu0 0.0
        %1401 = vmatpush1.msra.mxu0 %v1133
        %1402 = vmatprep.subr.mxu0 0.0
        %1403 = vmatpush1.msra.mxu0 %v1132
        %1404 = vmatprep.subr.mxu0 0.0
        %1405 = vmatpush1.msra.mxu0 %v1131
        %1406 = vmatprep.subr.mxu0 0.0
        %1407 = vmatpush1.msra.mxu0 %v1130
        %1408 = vmatprep.subr.mxu0 0.0
        %1409 = vmatpush1.msra.mxu0 %v1129
        %1410 = vmatprep.subr.mxu0 0.0
        %1411 = vmatpush1.msra.mxu0 %v1128
        %1412 = vmatprep.subr.mxu0 0.0
        %1413 = vmatpush1.msra.mxu0 %v1127
        %1414 = vmatprep.subr.mxu0 0.0
        %1415 = vmatpush1.msra.mxu0 %v1126
        %1416 = vmatprep.subr.mxu0 0.0
        %1417 = vmatpush1.msra.mxu0 %v1125
        %1418 = vmatprep.subr.mxu0 0.0
        %1419 = vmatpush1.msra.mxu0 %v1124
        %1420 = vmatprep.subr.mxu0 0.0
        %1421 = vmatpush2.msra.mxu0 0.0
        %1422 = vmatprep.subr.mxu0 0.0
        %1423 = vmatpush2.msra.mxu0 0.0
        %1424 = vmatprep.subr.mxu0 0.0
        %1425 = vmatpush2.msra.mxu0 0.0
        %1426 = vmatprep.subr.mxu0 0.0
        %1427 = vmatpush2.msra.mxu0 0.0
        %1428 = vmatprep.subr.mxu0 0.0
        %1429 = vmatpush2.msra.mxu0 0.0
        %1430 = vmatprep.subr.mxu0 0.0
        %1431 = vmatpush2.msra.mxu0 0.0
        %1432 = vmatprep.subr.mxu0 0.0
        %1433 = vmatpush2.msra.mxu0 0.0
        %1434 = vmatprep.subr.mxu0 0.0
        %1435 = vmatpush2.msra.mxu0 0.0
        %1436 = vmatprep.subr.mxu0 0.0
        %1437 = vmatpush2.msra.mxu0 0.0
        %1438 = vmatprep.subr.mxu0 0.0
        %1439 = vmatpush2.msra.mxu0 0.0
        %1440 = vmatprep.subr.mxu0 0.0
        %1441 = vmatpush2.msra.mxu0 0.0
        %1442 = vmatprep.subr.mxu0 0.0
        %1443 = vmatpush2.msra.mxu0 0.0
        %1444 = vmatprep.subr.mxu0 0.0
        %1445 = vmatpush2.msra.mxu0 0.0
        %1446 = vmatprep.subr.mxu0 0.0
        %1447 = vmatpush2.msra.mxu0 0.0
        %1448 = vmatprep.subr.mxu0 0.0
        %1449 = vmatpush2.msra.mxu0 0.0
        %1450 = vmatprep.subr.mxu0 0.0
        %1451 = vmatpush2.msra.mxu0 0.0
        %1452 = vmatprep.mubr.f32.mxu0 0.0
        %1453 = vmatmul.mubr.f32.gmra.mxu0 %v1243
        %v1454 = vpop.f32.mrf.mxu0
        %v1455 = vadd.f32 %v1385, %v1454
        %v1456 = vpop.f32.mrf.mxu0
        %1457 = vdwg.mxu0
        %v1458 = vsel %vm1173, %v929, 0
        %1460 = vmatprep.subr.mxu0 0.0
        %1461 = vmatpush1.msra.mxu0 0.0
        %1462 = vmatprep.subr.mxu0 0.0
        %1463 = vmatpush1.msra.mxu0 0.0
        %1464 = vmatprep.subr.mxu0 0.0
        %1465 = vmatpush1.msra.mxu0 0.0
        %1466 = vmatprep.subr.mxu0 0.0
        %1467 = vmatpush1.msra.mxu0 0.0
        %1468 = vmatprep.subr.mxu0 0.0
        %1469 = vmatpush1.msra.mxu0 0.0
        %1470 = vmatprep.subr.mxu0 0.0
        %1471 = vmatpush1.msra.mxu0 0.0
        %1472 = vmatprep.subr.mxu0 0.0
        %1473 = vmatpush1.msra.mxu0 0.0
        %1474 = vmatprep.subr.mxu0 0.0
        %1475 = vmatpush1.msra.mxu0 0.0
        %1476 = vmatprep.subr.mxu0 0.0
        %1477 = vmatpush1.msra.mxu0 0.0
        %1478 = vmatprep.subr.mxu0 0.0
        %1479 = vmatpush1.msra.mxu0 0.0
        %1480 = vmatprep.subr.mxu0 0.0
        %1481 = vmatpush1.msra.mxu0 0.0
        %1482 = vmatprep.subr.mxu0 0.0
        %1483 = vmatpush1.msra.mxu0 0.0
        %1484 = vmatprep.subr.mxu0 0.0
        %1485 = vmatpush1.msra.mxu0 0.0
        %1486 = vmatprep.subr.mxu0 0.0
        %1487 = vmatpush1.msra.mxu0 0.0
        %1488 = vmatprep.subr.mxu0 0.0
        %1489 = vmatpush1.msra.mxu0 %v1121
        %1490 = vmatprep.subr.mxu0 0.0
        %1491 = vmatpush1.msra.mxu0 %v1120
        %1492 = vmatprep.subr.mxu0 0.0
        %1493 = vmatpush2.msra.mxu0 0.0
        %1494 = vmatprep.subr.mxu0 0.0
        %1495 = vmatpush2.msra.mxu0 0.0
        %1496 = vmatprep.subr.mxu0 0.0
        %1497 = vmatpush2.msra.mxu0 0.0
        %1498 = vmatprep.subr.mxu0 0.0
        %1499 = vmatpush2.msra.mxu0 0.0
        %1500 = vmatprep.subr.mxu0 0.0
        %1501 = vmatpush2.msra.mxu0 0.0
        %1502 = vmatprep.subr.mxu0 0.0
        %1503 = vmatpush2.msra.mxu0 0.0
        %1504 = vmatprep.subr.mxu0 0.0
        %1505 = vmatpush2.msra.mxu0 0.0
        %1506 = vmatprep.subr.mxu0 0.0
        %1507 = vmatpush2.msra.mxu0 0.0
        %1508 = vmatprep.subr.mxu0 0.0
        %1509 = vmatpush2.msra.mxu0 0.0
        %1510 = vmatprep.subr.mxu0 0.0
        %1511 = vmatpush2.msra.mxu0 0.0
        %1512 = vmatprep.subr.mxu0 0.0
        %1513 = vmatpush2.msra.mxu0 0.0
        %1514 = vmatprep.subr.mxu0 0.0
        %1515 = vmatpush2.msra.mxu0 0.0
        %1516 = vmatprep.subr.mxu0 0.0
        %1517 = vmatpush2.msra.mxu0 0.0
        %1518 = vmatprep.subr.mxu0 0.0
        %1519 = vmatpush2.msra.mxu0 0.0
        %1520 = vmatprep.subr.mxu0 0.0
        %1521 = vmatpush2.msra.mxu0 0.0
        %1522 = vmatprep.subr.mxu0 0.0
        %1523 = vmatpush2.msra.mxu0 0.0
        %1524 = vmatprep.mubr.f32.mxu0 0.0
        %1525 = vmatmul.mubr.f32.gmra.mxu0 %v1458
        %v1526 = vpop.f32.mrf.mxu0
        %v1527 = vadd.f32 0.0, %v1526
        %v1528 = vpop.f32.mrf.mxu0
        %1529 = vdwg.mxu0
        %1530 = vmatprep.subr.mxu0 0.0
        %1531 = vmatpush1.msra.mxu0 %v1171
        %1532 = vmatprep.subr.mxu0 0.0
        %1533 = vmatpush1.msra.mxu0 %v1170
        %1534 = vmatprep.subr.mxu0 0.0
        %1535 = vmatpush1.msra.mxu0 %v1169
        %1536 = vmatprep.subr.mxu0 0.0
        %1537 = vmatpush1.msra.mxu0 %v1168
        %1538 = vmatprep.subr.mxu0 0.0
        %1539 = vmatpush1.msra.mxu0 %v1167
        %1540 = vmatprep.subr.mxu0 0.0
        %1541 = vmatpush1.msra.mxu0 %v1166
        %1542 = vmatprep.subr.mxu0 0.0
        %1543 = vmatpush1.msra.mxu0 %v1165
        %1544 = vmatprep.subr.mxu0 0.0
        %1545 = vmatpush1.msra.mxu0 %v1164
        %1546 = vmatprep.subr.mxu0 0.0
        %1547 = vmatpush1.msra.mxu0 %v1163
        %1548 = vmatprep.subr.mxu0 0.0
        %1549 = vmatpush1.msra.mxu0 %v1162
        %1550 = vmatprep.subr.mxu0 0.0
        %1551 = vmatpush1.msra.mxu0 %v1161
        %1552 = vmatprep.subr.mxu0 0.0
        %1553 = vmatpush1.msra.mxu0 %v1160
        %1554 = vmatprep.subr.mxu0 0.0
        %1555 = vmatpush1.msra.mxu0 %v1159
        %1556 = vmatprep.subr.mxu0 0.0
        %1557 = vmatpush1.msra.mxu0 %v1158
        %1558 = vmatprep.subr.mxu0 0.0
        %1559 = vmatpush1.msra.mxu0 %v1157
        %1560 = vmatprep.subr.mxu0 0.0
        %1561 = vmatpush1.msra.mxu0 %v1156
        %1562 = vmatprep.subr.mxu0 0.0
        %1563 = vmatpush2.msra.mxu0 0.0
        %1564 = vmatprep.subr.mxu0 0.0
        %1565 = vmatpush2.msra.mxu0 0.0
        %1566 = vmatprep.subr.mxu0 0.0
        %1567 = vmatpush2.msra.mxu0 0.0
        %1568 = vmatprep.subr.mxu0 0.0
        %1569 = vmatpush2.msra.mxu0 0.0
        %1570 = vmatprep.subr.mxu0 0.0
        %1571 = vmatpush2.msra.mxu0 0.0
        %1572 = vmatprep.subr.mxu0 0.0
        %1573 = vmatpush2.msra.mxu0 0.0
        %1574 = vmatprep.subr.mxu0 0.0
        %1575 = vmatpush2.msra.mxu0 0.0
        %1576 = vmatprep.subr.mxu0 0.0
        %1577 = vmatpush2.msra.mxu0 0.0
        %1578 = vmatprep.subr.mxu0 0.0
        %1579 = vmatpush2.msra.mxu0 0.0
        %1580 = vmatprep.subr.mxu0 0.0
        %1581 = vmatpush2.msra.mxu0 0.0
        %1582 = vmatprep.subr.mxu0 0.0
        %1583 = vmatpush2.msra.mxu0 0.0
        %1584 = vmatprep.subr.mxu0 0.0
        %1585 = vmatpush2.msra.mxu0 0.0
        %1586 = vmatprep.subr.mxu0 0.0
        %1587 = vmatpush2.msra.mxu0 0.0
        %1588 = vmatprep.subr.mxu0 0.0
        %1589 = vmatpush2.msra.mxu0 0.0
        %1590 = vmatprep.subr.mxu0 0.0
        %1591 = vmatpush2.msra.mxu0 0.0
        %1592 = vmatprep.subr.mxu0 0.0
        %1593 = vmatpush2.msra.mxu0 0.0
        %1594 = vmatprep.mubr.f32.mxu0 0.0
        %1595 = vmatmul.mubr.f32.gmra.mxu0 %v1527
        %v1596 = vpop.f32.mrf.mxu0
        %v1597 = vadd.f32 0.0, %v1596
        %v1598 = vpop.f32.mrf.mxu0
        %1599 = vdwg.mxu0
        %v1600 = vadd.f32 %v1455, %v1597
        %v1601 = vlaneseq
        %v1602 = vshrl.u32 %v1601, 7
        %v1603 = vsub.s32 0, %v1602
        %v1604 = vrot.slane %v1172, %v1603
        %v1605 = vadd.f32 %v1600, %v1604
        %vm1606 = vcmp.gt.f32.partialorder %v1605, 0.0
        %v1607 = vmul.f32 %v1605, 0.2
        %v1608 = vsel %vm1606, %v1605, %v1607
        %v1609 = vlaneseq
        %v1610 = vshrl.u32 %v1609, 7
        %v1611 = vsub.s32 1, %v1610
        %v1612 = vrot.slane %v1172, %v1611
        %v1613 = vmul.f32 %v1608, %v1612
        %v1614 = vlaneseq
        %v1615 = vshrl.u32 %v1614, 7
        %v1616 = vsub.s32 2, %v1615
        %v1617 = vrot.slane %v1172, %v1616
        %v1618 = vadd.f32 %v1613, %v1617
        %1619 = vst [vmem:[%s552] sm:$0xff] %v1618
        %v1620 = vld [vmem:[%s424] sm:$0xff]
        %v1621 = vld [vmem:[%s424 + $0x8] sm:$0xff]
        %v1622 = vld [vmem:[%s424 + $0x10] sm:$0xff]
        %v1623 = vld [vmem:[%s424 + $0x18] sm:$0xff]
        %v1624 = vld [vmem:[%s424 + $0x20] sm:$0xff]
        %v1625 = vld [vmem:[%s424 + $0x28] sm:$0xff]
        %v1626 = vld [vmem:[%s424 + $0x30] sm:$0xff]
        %v1627 = vld [vmem:[%s424 + $0x38] sm:$0xff]
        %v1628 = vld [vmem:[%s424 + $0x40] sm:$0xff]
        %v1629 = vld [vmem:[%s424 + $0x48] sm:$0xff]
        %v1630 = vld [vmem:[%s424 + $0x50] sm:$0xff]
        %v1631 = vld [vmem:[%s424 + $0x58] sm:$0xff]
        %v1632 = vld [vmem:[%s424 + $0x60] sm:$0xff]
        %v1633 = vld [vmem:[%s424 + $0x68] sm:$0xff]
        %v1634 = vld [vmem:[%s424 + $0x70] sm:$0xff]
        %v1635 = vld [vmem:[%s424 + $0x78] sm:$0xff]
        %v1636 = vld [vmem:[%s424 + $0x80] sm:$0xff]
        %v1637 = vld [vmem:[%s424 + $0x88] sm:$0xff]
        %v1638 = vld [vmem:[%s424 + $0x90] sm:$0xff]
        %v1639 = vld [vmem:[%s424 + $0x98] sm:$0xff]
        %v1640 = vld [vmem:[%s424 + $0xa0] sm:$0xff]
        %v1641 = vld [vmem:[%s424 + $0xa8] sm:$0xff]
        %v1642 = vld [vmem:[%s424 + $0xb0] sm:$0xff]
        %v1643 = vld [vmem:[%s424 + $0xb8] sm:$0xff]
        %v1644 = vld [vmem:[%s424 + $0xc0] sm:$0xff]
        %v1645 = vld [vmem:[%s424 + $0xc8] sm:$0xff]
        %v1646 = vld [vmem:[%s424 + $0xd0] sm:$0xff]
        %v1647 = vld [vmem:[%s424 + $0xd8] sm:$0xff]
        %v1648 = vld [vmem:[%s424 + $0xe0] sm:$0xff]
        %v1649 = vld [vmem:[%s424 + $0xe8] sm:$0xff]
        %v1650 = vld [vmem:[%s424 + $0xf0] sm:$0xff]
        %v1651 = vld [vmem:[%s424 + $0xf8] sm:$0xff]
        %v1652 = vld [vmem:[%s424 + $0x100] sm:$0xff]
        %v1653 = vld [vmem:[%s424 + $0x108] sm:$0xff]
        %v1654 = vld [vmem:[%s424 + $0x110] sm:$0xff]
        %v1655 = vld [vmem:[%s424 + $0x118] sm:$0xff]
        %v1656 = vld [vmem:[%s424 + $0x120] sm:$0xff]
        %v1657 = vld [vmem:[%s424 + $0x128] sm:$0xff]
        %v1658 = vld [vmem:[%s424 + $0x130] sm:$0xff]
        %v1659 = vld [vmem:[%s424 + $0x138] sm:$0xff]
        %v1660 = vld [vmem:[%s424 + $0x140] sm:$0xff]
        %v1661 = vld [vmem:[%s424 + $0x148] sm:$0xff]
        %v1662 = vld [vmem:[%s424 + $0x150] sm:$0xff]
        %v1663 = vld [vmem:[%s424 + $0x158] sm:$0xff]
        %v1664 = vld [vmem:[%s424 + $0x160] sm:$0xff]
        %v1665 = vld [vmem:[%s424 + $0x168] sm:$0xff]
        %v1666 = vld [vmem:[%s424 + $0x170] sm:$0xff]
        %v1667 = vld [vmem:[%s424 + $0x178] sm:$0xff]
        %v1668 = vld [vmem:[%s535] sm:$0x7]
        %vm1669 = vcmask 64512
        %v1670 = vsel %vm1669, %v582, 0
        %1672 = vmatprep.subr.mxu0 0.0
        %1673 = vmatpush1.msra.mxu0 0.0
        %1674 = vmatprep.subr.mxu0 0.0
        %1675 = vmatpush1.msra.mxu0 0.0
        %1676 = vmatprep.subr.mxu0 0.0
        %1677 = vmatpush1.msra.mxu0 0.0
        %1678 = vmatprep.subr.mxu0 0.0
        %1679 = vmatpush1.msra.mxu0 0.0
        %1680 = vmatprep.subr.mxu0 0.0
        %1681 = vmatpush1.msra.mxu0 0.0
        %1682 = vmatprep.subr.mxu0 0.0
        %1683 = vmatpush1.msra.mxu0 0.0
        %1684 = vmatprep.subr.mxu0 0.0
        %1685 = vmatpush1.msra.mxu0 0.0
        %1686 = vmatprep.subr.mxu0 0.0
        %1687 = vmatpush1.msra.mxu0 0.0
        %1688 = vmatprep.subr.mxu0 0.0
        %1689 = vmatpush1.msra.mxu0 0.0
        %1690 = vmatprep.subr.mxu0 0.0
        %1691 = vmatpush1.msra.mxu0 0.0
        %1692 = vmatprep.subr.mxu0 0.0
        %1693 = vmatpush1.msra.mxu0 0.0
        %1694 = vmatprep.subr.mxu0 0.0
        %1695 = vmatpush1.msra.mxu0 0.0
        %1696 = vmatprep.subr.mxu0 0.0
        %1697 = vmatpush1.msra.mxu0 0.0
        %1698 = vmatprep.subr.mxu0 0.0
        %1699 = vmatpush1.msra.mxu0 0.0
        %1700 = vmatprep.subr.mxu0 0.0
        %1701 = vmatpush1.msra.mxu0 0.0
        %1702 = vmatprep.subr.mxu0 0.0
        %1703 = vmatpush1.msra.mxu0 %v1618
        %1704 = vmatprep.subr.mxu0 0.0
        %1705 = vmatpush2.msra.mxu0 0.0
        %1706 = vmatprep.subr.mxu0 0.0
        %1707 = vmatpush2.msra.mxu0 0.0
        %1708 = vmatprep.subr.mxu0 0.0
        %1709 = vmatpush2.msra.mxu0 0.0
        %1710 = vmatprep.subr.mxu0 0.0
        %1711 = vmatpush2.msra.mxu0 0.0
        %1712 = vmatprep.subr.mxu0 0.0
        %1713 = vmatpush2.msra.mxu0 0.0
        %1714 = vmatprep.subr.mxu0 0.0
        %1715 = vmatpush2.msra.mxu0 0.0
        %1716 = vmatprep.subr.mxu0 0.0
        %1717 = vmatpush2.msra.mxu0 0.0
        %1718 = vmatprep.subr.mxu0 0.0
        %1719 = vmatpush2.msra.mxu0 0.0
        %1720 = vmatprep.subr.mxu0 0.0
        %1721 = vmatpush2.msra.mxu0 0.0
        %1722 = vmatprep.subr.mxu0 0.0
        %1723 = vmatpush2.msra.mxu0 0.0
        %1724 = vmatprep.subr.mxu0 0.0
        %1725 = vmatpush2.msra.mxu0 0.0
        %1726 = vmatprep.subr.mxu0 0.0
        %1727 = vmatpush2.msra.mxu0 0.0
        %1728 = vmatprep.subr.mxu0 0.0
        %1729 = vmatpush2.msra.mxu0 0.0
        %1730 = vmatprep.subr.mxu0 0.0
        %1731 = vmatpush2.msra.mxu0 0.0
        %1732 = vmatprep.subr.mxu0 0.0
        %1733 = vmatpush2.msra.mxu0 0.0
        %1734 = vmatprep.subr.mxu0 0.0
        %1735 = vmatpush2.msra.mxu0 0.0
        %1736 = vmatprep.mubr.f32.mxu0 0.0
        %1737 = vmatmul.mubr.f32.gmra.mxu0 %v1670
        %v1738 = vpop.f32.mrf.mxu0
        %v1739 = vadd.f32 0.0, %v1738
        %v1740 = vpop.f32.mrf.mxu0
        %1741 = vdwg.mxu0
        %v1742 = vsel %vm1669, %v670, 0
        %1744 = vmatprep.subr.mxu0 0.0
        %1745 = vmatpush1.msra.mxu0 0.0
        %1746 = vmatprep.subr.mxu0 0.0
        %1747 = vmatpush1.msra.mxu0 0.0
        %1748 = vmatprep.subr.mxu0 0.0
        %1749 = vmatpush1.msra.mxu0 0.0
        %1750 = vmatprep.subr.mxu0 0.0
        %1751 = vmatpush1.msra.mxu0 0.0
        %1752 = vmatprep.subr.mxu0 0.0
        %1753 = vmatpush1.msra.mxu0 0.0
        %1754 = vmatprep.subr.mxu0 0.0
        %1755 = vmatpush1.msra.mxu0 0.0
        %1756 = vmatprep.subr.mxu0 0.0
        %1757 = vmatpush1.msra.mxu0 0.0
        %1758 = vmatprep.subr.mxu0 0.0
        %1759 = vmatpush1.msra.mxu0 0.0
        %1760 = vmatprep.subr.mxu0 0.0
        %1761 = vmatpush1.msra.mxu0 0.0
        %1762 = vmatprep.subr.mxu0 0.0
        %1763 = vmatpush1.msra.mxu0 0.0
        %1764 = vmatprep.subr.mxu0 0.0
        %1765 = vmatpush1.msra.mxu0 0.0
        %1766 = vmatprep.subr.mxu0 0.0
        %1767 = vmatpush1.msra.mxu0 0.0
        %1768 = vmatprep.subr.mxu0 0.0
        %1769 = vmatpush1.msra.mxu0 0.0
        %1770 = vmatprep.subr.mxu0 0.0
        %1771 = vmatpush1.msra.mxu0 0.0
        %1772 = vmatprep.subr.mxu0 0.0
        %1773 = vmatpush1.msra.mxu0 0.0
        %1774 = vmatprep.subr.mxu0 0.0
        %1775 = vmatpush1.msra.mxu0 %v1618
        %1776 = vmatprep.subr.mxu0 0.0
        %1777 = vmatpush2.msra.mxu0 0.0
        %1778 = vmatprep.subr.mxu0 0.0
        %1779 = vmatpush2.msra.mxu0 0.0
        %1780 = vmatprep.subr.mxu0 0.0
        %1781 = vmatpush2.msra.mxu0 0.0
        %1782 = vmatprep.subr.mxu0 0.0
        %1783 = vmatpush2.msra.mxu0 0.0
        %1784 = vmatprep.subr.mxu0 0.0
        %1785 = vmatpush2.msra.mxu0 0.0
        %1786 = vmatprep.subr.mxu0 0.0
        %1787 = vmatpush2.msra.mxu0 0.0
        %1788 = vmatprep.subr.mxu0 0.0
        %1789 = vmatpush2.msra.mxu0 0.0
        %1790 = vmatprep.subr.mxu0 0.0
        %1791 = vmatpush2.msra.mxu0 0.0
        %1792 = vmatprep.subr.mxu0 0.0
        %1793 = vmatpush2.msra.mxu0 0.0
        %1794 = vmatprep.subr.mxu0 0.0
        %1795 = vmatpush2.msra.mxu0 0.0
        %1796 = vmatprep.subr.mxu0 0.0
        %1797 = vmatpush2.msra.mxu0 0.0
        %1798 = vmatprep.subr.mxu0 0.0
        %1799 = vmatpush2.msra.mxu0 0.0
        %1800 = vmatprep.subr.mxu0 0.0
        %1801 = vmatpush2.msra.mxu0 0.0
        %1802 = vmatprep.subr.mxu0 0.0
        %1803 = vmatpush2.msra.mxu0 0.0
        %1804 = vmatprep.subr.mxu0 0.0
        %1805 = vmatpush2.msra.mxu0 0.0
        %1806 = vmatprep.subr.mxu0 0.0
        %1807 = vmatpush2.msra.mxu0 0.0
        %1808 = vmatprep.mubr.f32.mxu0 0.0
        %1809 = vmatmul.mubr.f32.gmra.mxu0 %v1742
        %v1810 = vpop.f32.mrf.mxu0
        %v1811 = vadd.f32 0.0, %v1810
        %v1812 = vpop.f32.mrf.mxu0
        %1813 = vdwg.mxu0
        %1814 = vmatprep.subr.mxu0 0.0
        %1815 = vmatpush1.msra.mxu0 %v1651
        %1816 = vmatprep.subr.mxu0 0.0
        %1817 = vmatpush1.msra.mxu0 %v1650
        %1818 = vmatprep.subr.mxu0 0.0
        %1819 = vmatpush1.msra.mxu0 %v1649
        %1820 = vmatprep.subr.mxu0 0.0
        %1821 = vmatpush1.msra.mxu0 %v1648
        %1822 = vmatprep.subr.mxu0 0.0
        %1823 = vmatpush1.msra.mxu0 %v1647
        %1824 = vmatprep.subr.mxu0 0.0
        %1825 = vmatpush1.msra.mxu0 %v1646
        %1826 = vmatprep.subr.mxu0 0.0
        %1827 = vmatpush1.msra.mxu0 %v1645
        %1828 = vmatprep.subr.mxu0 0.0
        %1829 = vmatpush1.msra.mxu0 %v1644
        %1830 = vmatprep.subr.mxu0 0.0
        %1831 = vmatpush1.msra.mxu0 %v1643
        %1832 = vmatprep.subr.mxu0 0.0
        %1833 = vmatpush1.msra.mxu0 %v1642
        %1834 = vmatprep.subr.mxu0 0.0
        %1835 = vmatpush1.msra.mxu0 %v1641
        %1836 = vmatprep.subr.mxu0 0.0
        %1837 = vmatpush1.msra.mxu0 %v1640
        %1838 = vmatprep.subr.mxu0 0.0
        %1839 = vmatpush1.msra.mxu0 %v1639
        %1840 = vmatprep.subr.mxu0 0.0
        %1841 = vmatpush1.msra.mxu0 %v1638
        %1842 = vmatprep.subr.mxu0 0.0
        %1843 = vmatpush1.msra.mxu0 %v1637
        %1844 = vmatprep.subr.mxu0 0.0
        %1845 = vmatpush1.msra.mxu0 %v1636
        %1846 = vmatprep.subr.mxu0 0.0
        %1847 = vmatpush2.msra.mxu0 0.0
        %1848 = vmatprep.subr.mxu0 0.0
        %1849 = vmatpush2.msra.mxu0 0.0
        %1850 = vmatprep.subr.mxu0 0.0
        %1851 = vmatpush2.msra.mxu0 0.0
        %1852 = vmatprep.subr.mxu0 0.0
        %1853 = vmatpush2.msra.mxu0 0.0
        %1854 = vmatprep.subr.mxu0 0.0
        %1855 = vmatpush2.msra.mxu0 0.0
        %1856 = vmatprep.subr.mxu0 0.0
        %1857 = vmatpush2.msra.mxu0 0.0
        %1858 = vmatprep.subr.mxu0 0.0
        %1859 = vmatpush2.msra.mxu0 0.0
        %1860 = vmatprep.subr.mxu0 0.0
        %1861 = vmatpush2.msra.mxu0 0.0
        %1862 = vmatprep.subr.mxu0 0.0
        %1863 = vmatpush2.msra.mxu0 0.0
        %1864 = vmatprep.subr.mxu0 0.0
        %1865 = vmatpush2.msra.mxu0 0.0
        %1866 = vmatprep.subr.mxu0 0.0
        %1867 = vmatpush2.msra.mxu0 0.0
        %1868 = vmatprep.subr.mxu0 0.0
        %1869 = vmatpush2.msra.mxu0 0.0
        %1870 = vmatprep.subr.mxu0 0.0
        %1871 = vmatpush2.msra.mxu0 0.0
        %1872 = vmatprep.subr.mxu0 0.0
        %1873 = vmatpush2.msra.mxu0 0.0
        %1874 = vmatprep.subr.mxu0 0.0
        %1875 = vmatpush2.msra.mxu0 0.0
        %1876 = vmatprep.subr.mxu0 0.0
        %1877 = vmatpush2.msra.mxu0 0.0
        %1878 = vmatprep.mubr.f32.mxu0 0.0
        %1879 = vmatmul.mubr.f32.gmra.mxu0 %v1811
        %v1880 = vpop.f32.mrf.mxu0
        %v1881 = vadd.f32 0.0, %v1880
        %v1882 = vpop.f32.mrf.mxu0
        %1883 = vdwg.mxu0
        %1884 = vmatprep.subr.mxu0 0.0
        %1885 = vmatpush1.msra.mxu0 %v1635
        %1886 = vmatprep.subr.mxu0 0.0
        %1887 = vmatpush1.msra.mxu0 %v1634
        %1888 = vmatprep.subr.mxu0 0.0
        %1889 = vmatpush1.msra.mxu0 %v1633
        %1890 = vmatprep.subr.mxu0 0.0
        %1891 = vmatpush1.msra.mxu0 %v1632
        %1892 = vmatprep.subr.mxu0 0.0
        %1893 = vmatpush1.msra.mxu0 %v1631
        %1894 = vmatprep.subr.mxu0 0.0
        %1895 = vmatpush1.msra.mxu0 %v1630
        %1896 = vmatprep.subr.mxu0 0.0
        %1897 = vmatpush1.msra.mxu0 %v1629
        %1898 = vmatprep.subr.mxu0 0.0
        %1899 = vmatpush1.msra.mxu0 %v1628
        %1900 = vmatprep.subr.mxu0 0.0
        %1901 = vmatpush1.msra.mxu0 %v1627
        %1902 = vmatprep.subr.mxu0 0.0
        %1903 = vmatpush1.msra.mxu0 %v1626
        %1904 = vmatprep.subr.mxu0 0.0
        %1905 = vmatpush1.msra.mxu0 %v1625
        %1906 = vmatprep.subr.mxu0 0.0
        %1907 = vmatpush1.msra.mxu0 %v1624
        %1908 = vmatprep.subr.mxu0 0.0
        %1909 = vmatpush1.msra.mxu0 %v1623
        %1910 = vmatprep.subr.mxu0 0.0
        %1911 = vmatpush1.msra.mxu0 %v1622
        %1912 = vmatprep.subr.mxu0 0.0
        %1913 = vmatpush1.msra.mxu0 %v1621
        %1914 = vmatprep.subr.mxu0 0.0
        %1915 = vmatpush1.msra.mxu0 %v1620
        %1916 = vmatprep.subr.mxu0 0.0
        %1917 = vmatpush2.msra.mxu0 0.0
        %1918 = vmatprep.subr.mxu0 0.0
        %1919 = vmatpush2.msra.mxu0 0.0
        %1920 = vmatprep.subr.mxu0 0.0
        %1921 = vmatpush2.msra.mxu0 0.0
        %1922 = vmatprep.subr.mxu0 0.0
        %1923 = vmatpush2.msra.mxu0 0.0
        %1924 = vmatprep.subr.mxu0 0.0
        %1925 = vmatpush2.msra.mxu0 0.0
        %1926 = vmatprep.subr.mxu0 0.0
        %1927 = vmatpush2.msra.mxu0 0.0
        %1928 = vmatprep.subr.mxu0 0.0
        %1929 = vmatpush2.msra.mxu0 0.0
        %1930 = vmatprep.subr.mxu0 0.0
        %1931 = vmatpush2.msra.mxu0 0.0
        %1932 = vmatprep.subr.mxu0 0.0
        %1933 = vmatpush2.msra.mxu0 0.0
        %1934 = vmatprep.subr.mxu0 0.0
        %1935 = vmatpush2.msra.mxu0 0.0
        %1936 = vmatprep.subr.mxu0 0.0
        %1937 = vmatpush2.msra.mxu0 0.0
        %1938 = vmatprep.subr.mxu0 0.0
        %1939 = vmatpush2.msra.mxu0 0.0
        %1940 = vmatprep.subr.mxu0 0.0
        %1941 = vmatpush2.msra.mxu0 0.0
        %1942 = vmatprep.subr.mxu0 0.0
        %1943 = vmatpush2.msra.mxu0 0.0
        %1944 = vmatprep.subr.mxu0 0.0
        %1945 = vmatpush2.msra.mxu0 0.0
        %1946 = vmatprep.subr.mxu0 0.0
        %1947 = vmatpush2.msra.mxu0 0.0
        %1948 = vmatprep.mubr.f32.mxu0 0.0
        %1949 = vmatmul.mubr.f32.gmra.mxu0 %v1739
        %v1950 = vpop.f32.mrf.mxu0
        %v1951 = vadd.f32 %v1881, %v1950
        %v1952 = vpop.f32.mrf.mxu0
        %1953 = vdwg.mxu0
        %v1954 = vsel %vm1669, %v929, 0
        %1956 = vmatprep.subr.mxu0 0.0
        %1957 = vmatpush1.msra.mxu0 0.0
        %1958 = vmatprep.subr.mxu0 0.0
        %1959 = vmatpush1.msra.mxu0 0.0
        %1960 = vmatprep.subr.mxu0 0.0
        %1961 = vmatpush1.msra.mxu0 0.0
        %1962 = vmatprep.subr.mxu0 0.0
        %1963 = vmatpush1.msra.mxu0 0.0
        %1964 = vmatprep.subr.mxu0 0.0
        %1965 = vmatpush1.msra.mxu0 0.0
        %1966 = vmatprep.subr.mxu0 0.0
        %1967 = vmatpush1.msra.mxu0 0.0
        %1968 = vmatprep.subr.mxu0 0.0
        %1969 = vmatpush1.msra.mxu0 0.0
        %1970 = vmatprep.subr.mxu0 0.0
        %1971 = vmatpush1.msra.mxu0 0.0
        %1972 = vmatprep.subr.mxu0 0.0
        %1973 = vmatpush1.msra.mxu0 0.0
        %1974 = vmatprep.subr.mxu0 0.0
        %1975 = vmatpush1.msra.mxu0 0.0
        %1976 = vmatprep.subr.mxu0 0.0
        %1977 = vmatpush1.msra.mxu0 0.0
        %1978 = vmatprep.subr.mxu0 0.0
        %1979 = vmatpush1.msra.mxu0 0.0
        %1980 = vmatprep.subr.mxu0 0.0
        %1981 = vmatpush1.msra.mxu0 0.0
        %1982 = vmatprep.subr.mxu0 0.0
        %1983 = vmatpush1.msra.mxu0 0.0
        %1984 = vmatprep.subr.mxu0 0.0
        %1985 = vmatpush1.msra.mxu0 0.0
        %1986 = vmatprep.subr.mxu0 0.0
        %1987 = vmatpush1.msra.mxu0 %v1618
        %1988 = vmatprep.subr.mxu0 0.0
        %1989 = vmatpush2.msra.mxu0 0.0
        %1990 = vmatprep.subr.mxu0 0.0
        %1991 = vmatpush2.msra.mxu0 0.0
        %1992 = vmatprep.subr.mxu0 0.0
        %1993 = vmatpush2.msra.mxu0 0.0
        %1994 = vmatprep.subr.mxu0 0.0
        %1995 = vmatpush2.msra.mxu0 0.0
        %1996 = vmatprep.subr.mxu0 0.0
        %1997 = vmatpush2.msra.mxu0 0.0
        %1998 = vmatprep.subr.mxu0 0.0
        %1999 = vmatpush2.msra.mxu0 0.0
        %2000 = vmatprep.subr.mxu0 0.0
        %2001 = vmatpush2.msra.mxu0 0.0
        %2002 = vmatprep.subr.mxu0 0.0
        %2003 = vmatpush2.msra.mxu0 0.0
        %2004 = vmatprep.subr.mxu0 0.0
        %2005 = vmatpush2.msra.mxu0 0.0
        %2006 = vmatprep.subr.mxu0 0.0
        %2007 = vmatpush2.msra.mxu0 0.0
        %2008 = vmatprep.subr.mxu0 0.0
        %2009 = vmatpush2.msra.mxu0 0.0
        %2010 = vmatprep.subr.mxu0 0.0
        %2011 = vmatpush2.msra.mxu0 0.0
        %2012 = vmatprep.subr.mxu0 0.0
        %2013 = vmatpush2.msra.mxu0 0.0
        %2014 = vmatprep.subr.mxu0 0.0
        %2015 = vmatpush2.msra.mxu0 0.0
        %2016 = vmatprep.subr.mxu0 0.0
        %2017 = vmatpush2.msra.mxu0 0.0
        %2018 = vmatprep.subr.mxu0 0.0
        %2019 = vmatpush2.msra.mxu0 0.0
        %2020 = vmatprep.mubr.f32.mxu0 0.0
        %2021 = vmatmul.mubr.f32.gmra.mxu0 %v1954
        %v2022 = vpop.f32.mrf.mxu0
        %v2023 = vadd.f32 0.0, %v2022
        %v2024 = vpop.f32.mrf.mxu0
        %2025 = vdwg.mxu0
        %2026 = vmatprep.subr.mxu0 0.0
        %2027 = vmatpush1.msra.mxu0 %v1667
        %2028 = vmatprep.subr.mxu0 0.0
        %2029 = vmatpush1.msra.mxu0 %v1666
        %2030 = vmatprep.subr.mxu0 0.0
        %2031 = vmatpush1.msra.mxu0 %v1665
        %2032 = vmatprep.subr.mxu0 0.0
        %2033 = vmatpush1.msra.mxu0 %v1664
        %2034 = vmatprep.subr.mxu0 0.0
        %2035 = vmatpush1.msra.mxu0 %v1663
        %2036 = vmatprep.subr.mxu0 0.0
        %2037 = vmatpush1.msra.mxu0 %v1662
        %2038 = vmatprep.subr.mxu0 0.0
        %2039 = vmatpush1.msra.mxu0 %v1661
        %2040 = vmatprep.subr.mxu0 0.0
        %2041 = vmatpush1.msra.mxu0 %v1660
        %2042 = vmatprep.subr.mxu0 0.0
        %2043 = vmatpush1.msra.mxu0 %v1659
        %2044 = vmatprep.subr.mxu0 0.0
        %2045 = vmatpush1.msra.mxu0 %v1658
        %2046 = vmatprep.subr.mxu0 0.0
        %2047 = vmatpush1.msra.mxu0 %v1657
        %2048 = vmatprep.subr.mxu0 0.0
        %2049 = vmatpush1.msra.mxu0 %v1656
        %2050 = vmatprep.subr.mxu0 0.0
        %2051 = vmatpush1.msra.mxu0 %v1655
        %2052 = vmatprep.subr.mxu0 0.0
        %2053 = vmatpush1.msra.mxu0 %v1654
        %2054 = vmatprep.subr.mxu0 0.0
        %2055 = vmatpush1.msra.mxu0 %v1653
        %2056 = vmatprep.subr.mxu0 0.0
        %2057 = vmatpush1.msra.mxu0 %v1652
        %2058 = vmatprep.subr.mxu0 0.0
        %2059 = vmatpush2.msra.mxu0 0.0
        %2060 = vmatprep.subr.mxu0 0.0
        %2061 = vmatpush2.msra.mxu0 0.0
        %2062 = vmatprep.subr.mxu0 0.0
        %2063 = vmatpush2.msra.mxu0 0.0
        %2064 = vmatprep.subr.mxu0 0.0
        %2065 = vmatpush2.msra.mxu0 0.0
        %2066 = vmatprep.subr.mxu0 0.0
        %2067 = vmatpush2.msra.mxu0 0.0
        %2068 = vmatprep.subr.mxu0 0.0
        %2069 = vmatpush2.msra.mxu0 0.0
        %2070 = vmatprep.subr.mxu0 0.0
        %2071 = vmatpush2.msra.mxu0 0.0
        %2072 = vmatprep.subr.mxu0 0.0
        %2073 = vmatpush2.msra.mxu0 0.0
        %2074 = vmatprep.subr.mxu0 0.0
        %2075 = vmatpush2.msra.mxu0 0.0
        %2076 = vmatprep.subr.mxu0 0.0
        %2077 = vmatpush2.msra.mxu0 0.0
        %2078 = vmatprep.subr.mxu0 0.0
        %2079 = vmatpush2.msra.mxu0 0.0
        %2080 = vmatprep.subr.mxu0 0.0
        %2081 = vmatpush2.msra.mxu0 0.0
        %2082 = vmatprep.subr.mxu0 0.0
        %2083 = vmatpush2.msra.mxu0 0.0
        %2084 = vmatprep.subr.mxu0 0.0
        %2085 = vmatpush2.msra.mxu0 0.0
        %2086 = vmatprep.subr.mxu0 0.0
        %2087 = vmatpush2.msra.mxu0 0.0
        %2088 = vmatprep.subr.mxu0 0.0
        %2089 = vmatpush2.msra.mxu0 0.0
        %2090 = vmatprep.mubr.f32.mxu0 0.0
        %2091 = vmatmul.mubr.f32.gmra.mxu0 %v2023
        %v2092 = vpop.f32.mrf.mxu0
        %v2093 = vadd.f32 0.0, %v2092
        %v2094 = vpop.f32.mrf.mxu0
        %2095 = vdwg.mxu0
        %v2096 = vadd.f32 %v1951, %v2093
        %v2097 = vlaneseq
        %v2098 = vshrl.u32 %v2097, 7
        %v2099 = vsub.s32 0, %v2098
        %v2100 = vrot.slane %v1668, %v2099
        %v2101 = vadd.f32 %v2096, %v2100
        %vm2102 = vcmp.gt.f32.partialorder %v2101, 0.0
        %v2103 = vmul.f32 %v2101, 0.2
        %v2104 = vsel %vm2102, %v2101, %v2103
        %v2105 = vlaneseq
        %v2106 = vshrl.u32 %v2105, 7
        %v2107 = vsub.s32 1, %v2106
        %v2108 = vrot.slane %v1668, %v2107
        %v2109 = vmul.f32 %v2104, %v2108
        %v2110 = vlaneseq
        %v2111 = vshrl.u32 %v2110, 7
        %v2112 = vsub.s32 2, %v2111
        %v2113 = vrot.slane %v1668, %v2112
        %v2114 = vadd.f32 %v2109, %v2113
        %2115 = vst [vmem:[%s560] sm:$0xf] %v2114
        %p2116 = scmp.lt.s32.totalorder %s31, 1
        %s2117 = scalar_select %p2116, %s31, 1
        %p2118 = scmp.lt.s32.totalorder %s32, 1
        %s2119 = scalar_select %p2118, %s32, 1
        %s2120 = smul.addr %s2119, 2
        %s2121 = smul.addr %s2117, 4
        %s2122 = sadd.s32 %s2120, %s2121
        %s2123 = smul.addr %s2122, 8
        %s2124 = scalar_lea.vmem %s7, %s2123
        %p2125 = scmp.lt.s32.totalorder %s31, 1
        %s2126 = scalar_select %p2125, %s31, 1
        %p2127 = scmp.lt.s32.totalorder %s32, 1
        %s2128 = scalar_select %p2127, %s32, 1
        %s2129 = smul.addr %s2126, 2
        %s2130 = sadd.s32 %s2128, %s2129
        %s2131 = smul.addr %s2130, 8
        %s2132 = scalar_lea.vmem %s8, %s2131
        %p2133 = scmp.lt.s32.totalorder %s31, 1
        %s2134 = scalar_select %p2133, %s31, 1
        %p2135 = scmp.lt.s32.totalorder %s32, 1
        %s2136 = scalar_select %p2135, %s32, 1
        %s2137 = smul.addr %s2134, 2
        %s2138 = sadd.s32 %s2136, %s2137
        %s2139 = smul.addr %s2138, 4
        %s2140 = scalar_lea.vmem %s9, %s2139
        // Predicated region
        $region57: #{cosine_discriminator_forward.2} parent=47 // pred_check
          %p2141 = pneg %p243
        $region58: #{cosine_discriminator_forward.2} parent=47 // pred_check_branch
          %2143 = sbr.rel (%p2141) target = $region60
        $region59: #{cosine_discriminator_forward.2} parent=47 // pred_region
          _
        $region60: #{cosine_discriminator_forward.2} parent=47 // pred_fallthru
          _
        // Predicated region
        $region61: #{cosine_discriminator_forward.2} parent=47 // pred_check
          %p2144 = pneg %p271
        $region62: #{cosine_discriminator_forward.2} parent=47 // pred_check_branch
          %2146 = sbr.rel (%p2144) target = $region64
        $region63: #{cosine_discriminator_forward.2} parent=47 // pred_region
          _
        $region64: #{cosine_discriminator_forward.2} parent=47 // pred_fallthru
          _
        // Predicated region
        $region65: #{cosine_discriminator_forward.2} parent=47 // pred_check
          %p2147 = pneg %p299
        $region66: #{cosine_discriminator_forward.2} parent=47 // pred_check_branch
          %2149 = sbr.rel (%p2147) target = $region68
        $region67: #{cosine_discriminator_forward.2} parent=47 // pred_region
          _
        $region68: #{cosine_discriminator_forward.2} parent=47 // pred_fallthru
          _
      $region48: #{cosine_discriminator_forward.2} parent=5 // pred_fallthru
        _
      %p2150 = scmp.le.s32.totalorder 2, %s22
      // Predicated region
      $region69: #{cosine_discriminator_forward.2} parent=5 // pred_check
        %p2151 = pneg %p2150
      $region70: #{cosine_discriminator_forward.2} parent=5 // pred_check_branch
        %2153 = sbr.rel (%p2151) target = $region72
      $region71: #{cosine_discriminator_forward.2} parent=5 // pred_region
        %s2154 = ssub.s32 %s22, 2
        // Predicated region
        $region73: #{cosine_discriminator_forward.2} parent=71 // pred_check
          %p2155 = pneg %p249
        $region74: #{cosine_discriminator_forward.2} parent=71 // pred_check_branch
          %2157 = sbr.rel (%p2155) target = $region76
        $region75: #{cosine_discriminator_forward.2} parent=71 // pred_region
          %p2158 = scmp.lt.s32.totalorder %s33, 1
          %s2159 = scalar_select %p2158, %s33, 1
          %p2160 = scmp.lt.s32.totalorder %s34, 1
          %s2161 = scalar_select %p2160, %s34, 1
          %s2162 = smul.addr %s2161, 2
          %s2163 = smul.addr %s2159, 4
          %s2164 = sadd.s32 %s2162, %s2163
          %s2165 = smul.addr %s2164, 8
          %s2166 = scalar_lea.vmem %s7, %s2165
        $region76: #{cosine_discriminator_forward.2} parent=71 // pred_fallthru
          _
        // Predicated region
        $region77: #{cosine_discriminator_forward.2} parent=71 // pred_check
          %p2167 = pneg %p277
        $region78: #{cosine_discriminator_forward.2} parent=71 // pred_check_branch
          %2169 = sbr.rel (%p2167) target = $region80
        $region79: #{cosine_discriminator_forward.2} parent=71 // pred_region
          %p2170 = scmp.lt.s32.totalorder %s33, 1
          %s2171 = scalar_select %p2170, %s33, 1
          %p2172 = scmp.lt.s32.totalorder %s34, 1
          %s2173 = scalar_select %p2172, %s34, 1
          %s2174 = smul.addr %s2171, 2
          %s2175 = sadd.s32 %s2173, %s2174
          %s2176 = smul.addr %s2175, 8
          %s2177 = scalar_lea.vmem %s8, %s2176
        $region80: #{cosine_discriminator_forward.2} parent=71 // pred_fallthru
          _
        // Predicated region
        $region81: #{cosine_discriminator_forward.2} parent=71 // pred_check
          %p2178 = pneg %p305
        $region82: #{cosine_discriminator_forward.2} parent=71 // pred_check_branch
          %2180 = sbr.rel (%p2178) target = $region84
        $region83: #{cosine_discriminator_forward.2} parent=71 // pred_region
          %p2181 = scmp.lt.s32.totalorder %s33, 1
          %s2182 = scalar_select %p2181, %s33, 1
          %p2183 = scmp.lt.s32.totalorder %s34, 1
          %s2184 = scalar_select %p2183, %s34, 1
          %s2185 = smul.addr %s2182, 2
          %s2186 = sadd.s32 %s2184, %s2185
          %s2187 = smul.addr %s2186, 4
          %s2188 = scalar_lea.vmem %s9, %s2187
        $region84: #{cosine_discriminator_forward.2} parent=71 // pred_fallthru
          _
      $region72: #{cosine_discriminator_forward.2} parent=5 // pred_fallthru
        _
    $region6: #{cosine_discriminator_forward.2} parent=1 // loop_footer
      %s26 = sadd.s32 1, %s22
    $region7: #{cosine_discriminator_forward.2} parent=1 // loop_footer_branch
      %21 = sbr.rel target = $region3
    $region8: #{cosine_discriminator_forward.2} parent=1 // loop_exit
      _
    %2189 = vsyncpa [#allocation3], 1
    %s2190 = scalar_lea.sflag [#allocation3], 1
    %2191 = vsyncpa %s2190, 1
    %2192 = vsyncpa [#allocation5], 1
    %s2193 = scalar_lea.sflag [#allocation5], 1
    %2194 = vsyncpa %s2193, 1

</llo_original>
